<compile_context>
chip_gen: v7x
topology: tpu7x:2x2x1
jax: 0.10.0
libtpu: 0.0.40
codegen_flags: <defaults>
</compile_context>

<pallas_src>
import functools

import jax
import jax.numpy as jnp
from jax.experimental import pallas as pl
from jax.experimental.pallas import tpu as pltpu


def _round_up(x, m):
    return ((x + m - 1) // m) * m


def _attn_body(x_ref, w_ref, v_ref, o_ref, q_chunk_fn, *, n_total, block_batch,
               chunk_batch):
    """x_ref (BT,S,D) | w_ref (D,D) | v_ref (1,D) | o_ref (1,BT,1)."""
    bt = x_ref.shape[0]
    cb = chunk_batch
    num_chunks = bt // cb

    w_f = w_ref[...].astype(jnp.float32)           # (D, D) VMEM-resident
    v_f = v_ref[...].astype(jnp.float32)           # (1, D)
    base = pl.program_id(0) * block_batch          # first batch row of this tile

    def chunk(c, carry):
        off = pl.multiple_of(c * cb, 8)
        # Single sweep over this chunk of x; everything below is (CB,*)-sized
        # so the live set stays at a few vregs (no spills, x read once).
        xc = x_ref[pl.ds(off, cb)].astype(jnp.float32)               # (CB, S, D)
        qc = q_chunk_fn(off, xc)                                     # (CB, D)
        # K-projection fusion: q . (x @ W.T) == (q @ W) . x   (small MXU matmul)
        qwc = jnp.dot(qc, w_f, preferred_element_type=jnp.float32)   # (CB, D)

        scores = jnp.sum(xc * qwc[:, None, :], axis=-1)              # (CB, S)
        xv = jnp.sum(xc * v_f[None, :, :], axis=-1)                  # (CB, S)

        # Fused softmax + context + projection:
        #   out[b] = sum_s softmax(scores)[b,s] * (x[b,s] . v)
        m = jnp.max(scores, axis=-1, keepdims=True)
        e = jnp.exp(scores - m)
        denom = jnp.sum(e, axis=-1, keepdims=True)                   # (CB, 1)
        numer = jnp.sum(e * xv, axis=-1, keepdims=True)              # (CB, 1)
        out_c = numer * pl.reciprocal(denom, approx=True)            # (CB, 1)

        # Ragged batch tail: rows past n_total come from a partial block
        # (garbage); zero them here instead of padding the input in the wrapper.
        rows = base + off + jax.lax.broadcasted_iota(jnp.int32, (cb, 1), 0)
        out_c = jnp.where(rows < n_total, out_c, 0.0)

        o_ref[0, pl.ds(off, cb), :] = out_c.astype(o_ref.dtype)
        return carry

    jax.lax.fori_loop(0, num_chunks, chunk, 0)


def _self_attn_kernel(x_ref, w_ref, v_ref, o_ref, *, attn_idx, n_total,
                      block_batch, chunk_batch):
    # Query is sliced from the already-resident x chunk -- no separate q input
    # stream, no wrapper-side strided gather, one fewer DMA per grid step.
    def q_chunk(off, xc):
        del off
        return xc[:, attn_idx, :]

    _attn_body(x_ref, w_ref, v_ref, o_ref, q_chunk, n_total=n_total,
               block_batch=block_batch, chunk_batch=chunk_batch)


def _cross_attn_kernel(q_ref, x_ref, w_ref, v_ref, o_ref, *, n_total,
                       block_batch, chunk_batch):
    def q_chunk(off, xc):
        del xc
        return q_ref[pl.ds(off, chunk_batch), :].astype(jnp.float32)

    _attn_body(x_ref, w_ref, v_ref, o_ref, q_chunk, n_total=n_total,
               block_batch=block_batch, chunk_batch=chunk_batch)


def self_attn_forward(input_seq, W, v, attn_idx=-1, cross_input=None,
                      cross_attn=False, block_batch=None):
    """Pallas implementation of SelfAttn.forward (univariate=True).

    input_seq : (n, S, D)  any float dtype (kept native for the DMA)
    W         : (D, D)     nn.Linear weight (module computes x @ W.T)
    v         : (D,)       projection parameter
    returns   : (n, 1)     float32
    """
    if cross_attn and cross_input is None:
        raise ValueError("Set cross_attn==True but no cross input provided.")
    input_seq = jnp.asarray(input_seq)
    n, S, D = input_seq.shape

    w = jnp.asarray(W, jnp.float32)
    if w.shape != (D, D):
        raise ValueError(f"W must have shape ({D}, {D}); got {w.shape}")
    v_row = jnp.asarray(v, jnp.float32).reshape(1, D)

    itemsize = input_seq.dtype.itemsize
    lane_pad = _round_up(D, 128)
    sublane_q = {4: 8, 2: 16, 1: 32}.get(itemsize, 8)
    padded_row_bytes = _round_up(S, sublane_q) * lane_pad * itemsize

    # Inner compute chunk: bound per-chunk (CB,S,D) temporaries to ~8 vregs.
    # TODO(synk): for very large S*D (>~8K elements) also chunk the sequence
    # axis inside the loop; not needed at this module's typical sizes.
    cb = max(8, min(256, (8192 // max(S * D, 1)) // 8 * 8))

    # Batch tile per grid step: ~4 MiB of (padded) x per block, never more than
    # the rounded-up batch; double-buffered this fits every generation's VMEM
    # (incl. v7x's 64 MiB), and real batches give >=2 tiles for v7x's 2 TCs.
    if block_batch is None:
        bt = (4 * 1024 * 1024) // max(padded_row_bytes, 1)
    else:
        bt = int(block_batch)
    bt = max(cb, (min(bt, 1024) // cb) * cb)
    bt = min(bt, _round_up(n, cb))
    num_tiles = pl.cdiv(n, bt)

    # Explicit VMEM budget (default scoped limits are only 16/32 MiB on v5e/v6e).
    w_bytes = _round_up(D, 8) * lane_pad * 4
    v_bytes = 8 * lane_pad * 4
    out_bytes = _round_up(bt, 8) * 128 * 4
    vmem_needed = 2 * (bt * padded_row_bytes + out_bytes + w_bytes + v_bytes)
    if cross_attn:
        vmem_needed += 2 * _round_up(bt, sublane_q) * lane_pad * itemsize
    vmem_limit = int(min(max(2 * vmem_needed, 32 * 1024 * 1024),
                         64 * 1024 * 1024))

    x_spec = pl.BlockSpec((bt, S, D), lambda b: (b, 0, 0))
    w_spec = pl.BlockSpec((D, D), lambda b: (0, 0))       # grid-invariant
    v_spec = pl.BlockSpec((1, D), lambda b: (0, 0))       # grid-invariant
    # TODO(synk): single-buffer W/v (pipeline_mode=pl.Buffered(1)) to reclaim
    # VMEM on v7x once that mode is universally supported.
    out_spec = pl.BlockSpec((1, bt, 1), lambda b: (b, 0, 0))

    static = dict(n_total=n, block_batch=bt, chunk_batch=cb)
    if cross_attn:
        q = jnp.asarray(cross_input)
        if q.size != n * D:
            raise ValueError(
                f"cross_input must have n*D = {n * D} elements; got {q.shape}")
        q = q.reshape(n, D)
        kernel = functools.partial(_cross_attn_kernel, **static)
        in_specs = [pl.BlockSpec((bt, D), lambda b: (b, 0)),
                    x_spec, w_spec, v_spec]
        operands = (q, input_seq, w, v_row)
    else:
        kernel = functools.partial(_self_attn_kernel, attn_idx=attn_idx % S,
                                   **static)
        in_specs = [x_spec, w_spec, v_spec]
        operands = (input_seq, w, v_row)

    out_tiled = pl.pallas_call(
        kernel,
        out_shape=jax.ShapeDtypeStruct((num_tiles, bt, 1), jnp.float32),
        grid=(num_tiles,),
        in_specs=in_specs,
        out_specs=out_spec,
        compiler_params=pltpu.CompilerParams(
            dimension_semantics=("parallel",),
            vmem_limit_bytes=vmem_limit),
    )(*operands)

    return out_tiled.reshape(num_tiles * bt)[:n].reshape(n, 1)


def _reference(input_seq, W, v, attn_idx=-1, cross_input=None):
    n, S, D = input_seq.shape
    if cross_input is None:
        cross_input = input_seq[:, attn_idx]
    q = cross_input.reshape(n, 1, D)
    k = jnp.einsum("nsd,ed->nse", input_seq, W)            # x @ W.T
    scores = jnp.einsum("nqd,nsd->nqs", q, k)
    p = jax.nn.softmax(scores, axis=-1)
    ctx = jnp.einsum("nqs,nsd->nqd", p, input_seq)
    return jnp.einsum("nqd,d->nq", ctx, v)


if __name__ == "__main__":
    key = jax.random.PRNGKey(0)
    n, S, D = 2, 8, 32
    k1, k2, k3, k4, k5 = jax.random.split(key, 5)

    input_seq = jax.random.normal(k1, (n, S, D), dtype=jnp.float32)
    # deterministic parameter init (nn.Linear-ish scale for W, randn*0.01 for v)
    W = jax.random.normal(k2, (D, D), dtype=jnp.float32) * (1.0 / jnp.sqrt(D))
    v = jax.random.normal(k3, (D,), dtype=jnp.float32) * 0.01

    # default (self-attention) path
    out = jax.block_until_ready(self_attn_forward(input_seq, W, v))
    ref = _reference(input_seq, W, v)
    assert out.shape == (n, 1)
    # approx reciprocal (EUP vrcp) carries ~1e-4 relative error -> 1e-3 budget
    assert jnp.allclose(out, ref, atol=1e-3, rtol=1e-3), (out, ref)

    # ragged batch (n not a multiple of the block): exercises the in-kernel
    # tail masking + multi-tile grid -- no wrapper-side padding copy is made.
    n2 = 70
    x2 = jax.random.normal(k4, (n2, S, D), dtype=jnp.float32)
    out2 = jax.block_until_ready(self_attn_forward(x2, W, v, block_batch=32))
    ref2 = _reference(x2, W, v)
    assert out2.shape == (n2, 1)
    assert jnp.allclose(out2, ref2, atol=1e-3, rtol=1e-3)

    # cross-attention path
    q_ext = jax.random.normal(k5, (n, D), dtype=jnp.float32)
    out3 = jax.block_until_ready(
        self_attn_forward(input_seq, W, v, cross_input=q_ext, cross_attn=True))
    ref3 = _reference(input_seq, W, v, cross_input=q_ext)
    assert jnp.allclose(out3, ref3, atol=1e-3, rtol=1e-3)

    # TODO(synk): univariate=False branch (separate query/key Linear) not
    # implemented; it is the same structure with one extra (CB,D)@(D,H) matmul.
    print("KERNEL_OK")
</pallas_src>

<mosaic_0001>
module attributes {stable_mosaic.version = 11 : i64} {
  func.func @_self_attn_kernel(%arg0: i32, %arg1: memref<32x8x32xf32, #tpu.memory_space<vmem>>, %arg2: memref<32x32xf32, #tpu.memory_space<vmem>>, %arg3: memref<1x32xf32, #tpu.memory_space<vmem>>, %arg4: memref<1x32x1xf32, #tpu.memory_space<vmem>>) attributes {dimension_semantics = [#tpu.dimension_semantics<parallel>], iteration_bounds = array<i64: 1>, scalar_prefetch = 0 : i64, scratch_operands = 0 : i64, tpu.core_type = #tpu.core_type<tc>, window_params = [{transform_indices = @transform_0, window_bounds = array<i64: 32, 8, 32>}, {pipeline_mode = #tpu.pipeline_mode<synchronous>, transform_indices = @transform_1, window_bounds = array<i64: 32, 32>}, {pipeline_mode = #tpu.pipeline_mode<synchronous>, transform_indices = @transform_2, window_bounds = array<i64: 1, 32>}, {transform_indices = @transform_3, window_bounds = array<i64: 1, 32, 1>}]} {
    %c0 = arith.constant 0 : index
    %c0_0 = arith.constant 0 : index
    %0 = vector.load %arg2[%c0, %c0_0] : memref<32x32xf32, #tpu.memory_space<vmem>>, vector<32x32xf32>
    %c0_1 = arith.constant 0 : index
    %c0_2 = arith.constant 0 : index
    %1 = vector.load %arg3[%c0_1, %c0_2] : memref<1x32xf32, #tpu.memory_space<vmem>>, vector<1x32xf32>
    %c32_i32 = arith.constant 32 : i32
    %2 = arith.muli %arg0, %c32_i32 : i32
    %c0_i32 = arith.constant 0 : i32
    %c32_i32_3 = arith.constant 32 : i32
    %3 = arith.muli %c0_i32, %c32_i32_3 : i32
    %4 = tpu.assume_multiple %3, 8 : i32
    %5 = arith.index_cast %4 : i32 to index
    %c0_4 = arith.constant 0 : index
    %c0_5 = arith.constant 0 : index
    %6 = vector.load %arg1[%5, %c0_4, %c0_5] : memref<32x8x32xf32, #tpu.memory_space<vmem>>, vector<32x8x32xf32>
    %7 = vector.extract_strided_slice %6 {offsets = [0, 7, 0], sizes = [32, 1, 32], strides = [1, 1, 1]} : vector<32x8x32xf32> to vector<32x1x32xf32>
    %8 = vector.shape_cast %7 : vector<32x1x32xf32> to vector<32x32xf32>
    %cst = arith.constant dense<0.000000e+00> : vector<32x32xf32>
    %9 = tpu.matmul %8, %0, %cst {dimension_numbers = #tpu.dot_dimension_numbers<[1], [0], [0], [1], [0, 0, 1, 1], [], []>} : vector<32x32xf32>, vector<32x32xf32>, vector<32x32xf32> -> vector<32x32xf32>
    %10 = vector.shape_cast %9 : vector<32x32xf32> to vector<32x1x32xf32>
    %11 = vector.broadcast %10 : vector<32x1x32xf32> to vector<32x8x32xf32>
    %12 = arith.mulf %6, %11 : vector<32x8x32xf32>
    %cst_6 = arith.constant dense<0.000000e+00> : vector<32x8xf32>
    %13 = vector.multi_reduction <add>, %12, %cst_6 [2] : vector<32x8x32xf32> to vector<32x8xf32>
    %14 = vector.shape_cast %1 : vector<1x32xf32> to vector<1x1x32xf32>
    %15 = vector.broadcast %14 : vector<1x1x32xf32> to vector<32x8x32xf32>
    %16 = arith.mulf %6, %15 : vector<32x8x32xf32>
    %cst_7 = arith.constant dense<0.000000e+00> : vector<32x8xf32>
    %17 = vector.multi_reduction <add>, %16, %cst_7 [2] : vector<32x8x32xf32> to vector<32x8xf32>
    %cst_8 = arith.constant dense<0xFF800000> : vector<32xf32>
    %18 = vector.multi_reduction <maximumf>, %13, %cst_8 [1] : vector<32x8xf32> to vector<32xf32>
    %19 = vector.shape_cast %18 : vector<32xf32> to vector<32x1xf32>
    %20 = vector.broadcast %19 : vector<32x1xf32> to vector<32x8xf32>
    %21 = arith.subf %13, %20 : vector<32x8xf32>
    %22 = math.exp %21 : vector<32x8xf32>
    %cst_9 = arith.constant dense<0.000000e+00> : vector<32xf32>
    %23 = vector.multi_reduction <add>, %22, %cst_9 [1] : vector<32x8xf32> to vector<32xf32>
    %24 = vector.shape_cast %23 : vector<32xf32> to vector<32x1xf32>
    %25 = arith.mulf %22, %17 : vector<32x8xf32>
    %cst_10 = arith.constant dense<0.000000e+00> : vector<32xf32>
    %26 = vector.multi_reduction <add>, %25, %cst_10 [1] : vector<32x8xf32> to vector<32xf32>
    %27 = vector.shape_cast %26 : vector<32xf32> to vector<32x1xf32>
    %28 = tpu.reciprocal %24 {approx = true} : vector<32x1xf32> -> vector<32x1xf32>
    %29 = arith.mulf %27, %28 : vector<32x1xf32>
    %30 = arith.addi %2, %4 : i32
    %31 = tpu.iota {dimensions = array<i32: 0>} : vector<32x1xi32>
    %32 = vector.broadcast %30 : i32 to vector<32x1xi32>
    %33 = arith.addi %32, %31 : vector<32x1xi32>
    %c2_i32 = arith.constant 2 : i32
    %34 = vector.broadcast %c2_i32 : i32 to vector<32x1xi32>
    %35 = arith.cmpi slt, %33, %34 : vector<32x1xi32>
    %cst_11 = arith.constant 0.000000e+00 : f32
    %36 = vector.broadcast %cst_11 : f32 to vector<32x1xf32>
    %37 = arith.select %35, %29, %36 : vector<32x1xi1>, vector<32x1xf32>
    %c0_12 = arith.constant 0 : index
    %38 = arith.index_cast %4 : i32 to index
    %c0_13 = arith.constant 0 : index
    %39 = vector.load %arg4[%c0_12, %38, %c0_13] : memref<1x32x1xf32, #tpu.memory_space<vmem>>, vector<1x32x1xf32>
    %40 = vector.shape_cast %39 : vector<1x32x1xf32> to vector<32x1xf32>
    %41 = vector.shape_cast %37 : vector<32x1xf32> to vector<1x32x1xf32>
    tpu.vector_store %arg4[%c0_12, %38, %c0_13], %41 {strides = array<i32>} : memref<1x32x1xf32, #tpu.memory_space<vmem>>, vector<1x32x1xf32>,
    %c1_i32 = arith.constant 1 : i32
    return
  }
  func.func @transform_0(%arg0: i32) -> (i32, i32, i32) {
    %c0_i32 = arith.constant 0 : i32
    %c0_i32_0 = arith.constant 0 : i32
    %c0_i32_1 = arith.constant 0 : i32
    return %arg0, %c0_i32, %c0_i32_0 : i32, i32, i32
  }
  func.func @transform_1(%arg0: i32) -> (i32, i32) {
    %c0_i32 = arith.constant 0 : i32
    %c0_i32_0 = arith.constant 0 : i32
    %c0_i32_1 = arith.constant 0 : i32
    return %c0_i32, %c0_i32_0 : i32, i32
  }
  func.func @transform_2(%arg0: i32) -> (i32, i32) {
    %c0_i32 = arith.constant 0 : i32
    %c0_i32_0 = arith.constant 0 : i32
    %c0_i32_1 = arith.constant 0 : i32
    return %c0_i32, %c0_i32_0 : i32, i32
  }
  func.func @transform_3(%arg0: i32) -> (i32, i32, i32) {
    %c0_i32 = arith.constant 0 : i32
    %c0_i32_0 = arith.constant 0 : i32
    %c0_i32_1 = arith.constant 0 : i32
    return %arg0, %c0_i32, %c0_i32_0 : i32, i32, i32
  }
}

</mosaic_0001>

<llo_original>
// kernel: tpu_custom_call.1
$region0: #{tpu_custom_call.1}
  #allocation0 [shape = 'u32[]', space=smem, size = 0x4, offset = 0x4, fixed_abs, tag = 'smem constant byte address 0x4 - core index']
  #allocation1 [shape = 'u32[144,128]{1,0:T(1,128)}', space=vmem, size = 0x12000, scoped, tag = 'internal scratch']
  %s0 = inlined_call_operand.hbm [shape: f32[2,8,32], index: 0, kind: input, shape index: {}]
  %s1 = inlined_call_operand.hbm [shape: f32[32,32], index: 1, kind: input, shape index: {}]
  %s2 = inlined_call_operand.vmem [shape: f32[1,32], index: 2, kind: input, shape index: {}]
  %s3 = inlined_call_operand.vmem [shape: f32[1,32,1], index: 3, kind: output, shape index: {}]
  %s4 = sld [smem:[#allocation0]]
  $region30: #{tpu_custom_call.1} parent=0
    _
  %s6 = ssub.s32 1, %s4
  %s7 = scalar_select 0, %s6, %s4
  $region1: #{tpu_custom_call.1} parent=0
    #allocation2 [shape = 'u8[131072]{0}', space=vmem, size = 0x20000, scoped, tag = 'input window, operand 0, single buffered']
    #allocation3 [shape = 's32[1]{0}', space=sflag, size = 0x4, scoped, tag = 'scoped memory for tpu_custom_call.1']
    #allocation4 [shape = 'u8[16384]{0}', space=vmem, size = 0x4000, scoped, tag = 'input window, operand 1, single buffered']
    #allocation5 [shape = 's32[1]{0}', space=sflag, size = 0x4, scoped, tag = 'scoped memory for tpu_custom_call.1']
    %8 = vsyncpa [#allocation3], 0
    %9 = vsyncpa [#allocation5], 0
    // Predicated region
    $region2: #{tpu_custom_call.1} parent=1 // pred_check
      _
    $region3: #{tpu_custom_call.1} parent=1 // pred_check_branch
      %11 = sbr.rel (0) target = $region5
    $region4: #{tpu_custom_call.1} parent=1 // pred_region
      %s13 = ssub.s32 4096, 256
      %14 = vsyncadd [#allocation3], %s13
      %s15 = sshll.u32 [#allocation2], 4
      %s16 = int_to_ptr.vmem [resolvable:$true] %s15
      %21 = dma.hbm_to_vmem [thread:$0]  %s0, 256, %s16, [#allocation3], 128, 128, 8
    $region5: #{tpu_custom_call.1} parent=1 // pred_fallthru
      _
    // Predicated region
    $region6: #{tpu_custom_call.1} parent=1 // pred_check
      _
    $region7: #{tpu_custom_call.1} parent=1 // pred_check_branch
      %23 = sbr.rel (0) target = $region9
    $region8: #{tpu_custom_call.1} parent=1 // pred_region
      %s25 = ssub.s32 512, 512
      %26 = vsyncadd [#allocation5], %s25
      %s27 = sshll.u32 [#allocation4], 4
      %s28 = int_to_ptr.vmem [resolvable:$true] %s27
      %33 = dma.hbm_to_vmem [thread:$0]  %s1, 512, %s28, [#allocation5], 128, 128, 8
    $region9: #{tpu_custom_call.1} parent=1 // pred_fallthru
      _
    // Predicated region
    $region10: #{tpu_custom_call.1} parent=1 // pred_check
      _
    $region11: #{tpu_custom_call.1} parent=1 // pred_check_branch
      %35 = sbr.rel (0) target = $region13
    $region12: #{tpu_custom_call.1} parent=1 // pred_region
      _
    $region13: #{tpu_custom_call.1} parent=1 // pred_fallthru
      _
    // Predicated region
    $region14: #{tpu_custom_call.1} parent=1 // pred_check
      _
    $region15: #{tpu_custom_call.1} parent=1 // pred_check_branch
      %37 = sbr.rel (0) target = $region17
    $region16: #{tpu_custom_call.1} parent=1 // pred_region
      %38 = dma.done [#allocation3], 4096
    $region17: #{tpu_custom_call.1} parent=1 // pred_fallthru
      _
    // Predicated region
    $region18: #{tpu_custom_call.1} parent=1 // pred_check
      _
    $region19: #{tpu_custom_call.1} parent=1 // pred_check_branch
      %40 = sbr.rel (0) target = $region21
    $region20: #{tpu_custom_call.1} parent=1 // pred_region
      %41 = dma.done [#allocation5], 512
    $region21: #{tpu_custom_call.1} parent=1 // pred_fallthru
      _
    %v42 = vld [vmem:[#allocation4] sm:$0xff]
    %v43 = vld [vmem:[#allocation4 + $0x8] sm:$0xff]
    %v44 = vld [vmem:[#allocation4 + $0x10] sm:$0xff]
    %v45 = vld [vmem:[#allocation4 + $0x18] sm:$0xff]
    %v46 = vld [vmem:[%s2] sm:$0x1]
    %s47 = smul.u32 0, 32
    %s48 = smul.u32 0, 8
    %s49 = scalar_lea.vmem [#allocation2], %s48
    %v50 = vld [vmem:[%s49] sm:$0xff]
    %v51 = vld [vmem:[%s49 + $0x8] sm:$0xff]
    %v52 = vld [vmem:[%s49 + $0x10] sm:$0xff]
    %v53 = vld [vmem:[%s49 + $0x18] sm:$0xff]
    %v54 = vld [vmem:[%s49 + $0x20] sm:$0xff]
    %v55 = vld [vmem:[%s49 + $0x28] sm:$0xff]
    %v56 = vld [vmem:[%s49 + $0x30] sm:$0xff]
    %v57 = vld [vmem:[%s49 + $0x38] sm:$0xff]
    %v58 = vld [vmem:[%s49 + $0x40] sm:$0xff]
    %v59 = vld [vmem:[%s49 + $0x48] sm:$0xff]
    %v60 = vld [vmem:[%s49 + $0x50] sm:$0xff]
    %v61 = vld [vmem:[%s49 + $0x58] sm:$0xff]
    %v62 = vld [vmem:[%s49 + $0x60] sm:$0xff]
    %v63 = vld [vmem:[%s49 + $0x68] sm:$0xff]
    %v64 = vld [vmem:[%s49 + $0x70] sm:$0xff]
    %v65 = vld [vmem:[%s49 + $0x78] sm:$0xff]
    %v66 = vld [vmem:[%s49 + $0x80] sm:$0xff]
    %v67 = vld [vmem:[%s49 + $0x88] sm:$0xff]
    %v68 = vld [vmem:[%s49 + $0x90] sm:$0xff]
    %v69 = vld [vmem:[%s49 + $0x98] sm:$0xff]
    %v70 = vld [vmem:[%s49 + $0xa0] sm:$0xff]
    %v71 = vld [vmem:[%s49 + $0xa8] sm:$0xff]
    %v72 = vld [vmem:[%s49 + $0xb0] sm:$0xff]
    %v73 = vld [vmem:[%s49 + $0xb8] sm:$0xff]
    %v74 = vld [vmem:[%s49 + $0xc0] sm:$0xff]
    %v75 = vld [vmem:[%s49 + $0xc8] sm:$0xff]
    %v76 = vld [vmem:[%s49 + $0xd0] sm:$0xff]
    %v77 = vld [vmem:[%s49 + $0xd8] sm:$0xff]
    %v78 = vld [vmem:[%s49 + $0xe0] sm:$0xff]
    %v79 = vld [vmem:[%s49 + $0xe8] sm:$0xff]
    %v80 = vld [vmem:[%s49 + $0xf0] sm:$0xff]
    %v81 = vld [vmem:[%s49 + $0xf8] sm:$0xff]
    %v114 = vrot.slane %v50, 7
    %v115 = vrot.slane %v51, 6
    %vm116 = vcmask 1041409
    %v117 = vsel %vm116, %v115, %v114
    %v118 = vrot.slane %v52, 5
    %vm119 = vcmask 1042434
    %v120 = vsel %vm119, %v118, %v117
    %v121 = vrot.slane %v53, 4
    %vm122 = vcmask 1043459
    %v123 = vsel %vm122, %v121, %v120
    %v124 = vrot.slane %v54, 3
    %vm125 = vcmask 1044484
    %v126 = vsel %vm125, %v124, %v123
    %v127 = vrot.slane %v55, 2
    %vm128 = vcmask 1045509
    %v129 = vsel %vm128, %v127, %v126
    %v130 = vrot.slane %v56, 1
    %vm131 = vcmask 1046534
    %v132 = vsel %vm131, %v130, %v129
    %vm133 = vcmask 1047559
    %v134 = vsel %vm133, %v57, %v132
    %v135 = vrot.slane %v58, 7
    %v136 = vrot.slane %v59, 6
    %v137 = vsel %vm116, %v136, %v135
    %v138 = vrot.slane %v60, 5
    %v139 = vsel %vm119, %v138, %v137
    %v140 = vrot.slane %v61, 4
    %v141 = vsel %vm122, %v140, %v139
    %v142 = vrot.slane %v62, 3
    %v143 = vsel %vm125, %v142, %v141
    %v144 = vrot.slane %v63, 2
    %v145 = vsel %vm128, %v144, %v143
    %v146 = vrot.slane %v64, 1
    %v147 = vsel %vm131, %v146, %v145
    %v148 = vsel %vm133, %v65, %v147
    %v149 = vrot.slane %v66, 7
    %v150 = vrot.slane %v67, 6
    %v151 = vsel %vm116, %v150, %v149
    %v152 = vrot.slane %v68, 5
    %v153 = vsel %vm119, %v152, %v151
    %v154 = vrot.slane %v69, 4
    %v155 = vsel %vm122, %v154, %v153
    %v156 = vrot.slane %v70, 3
    %v157 = vsel %vm125, %v156, %v155
    %v158 = vrot.slane %v71, 2
    %v159 = vsel %vm128, %v158, %v157
    %v160 = vrot.slane %v72, 1
    %v161 = vsel %vm131, %v160, %v159
    %v162 = vsel %vm133, %v73, %v161
    %v163 = vrot.slane %v74, 7
    %v164 = vrot.slane %v75, 6
    %v165 = vsel %vm116, %v164, %v163
    %v166 = vrot.slane %v76, 5
    %v167 = vsel %vm119, %v166, %v165
    %v168 = vrot.slane %v77, 4
    %v169 = vsel %vm122, %v168, %v167
    %v170 = vrot.slane %v78, 3
    %v171 = vsel %vm125, %v170, %v169
    %v172 = vrot.slane %v79, 2
    %v173 = vsel %vm128, %v172, %v171
    %v174 = vrot.slane %v80, 1
    %v175 = vsel %vm131, %v174, %v173
    %v176 = vsel %vm133, %v81, %v175
    %vm177 = vcmask 261120
    %v178 = vsel %vm177, %v134, 0
    %v180 = vsel %vm177, %v148, 0
    %v182 = vsel %vm177, %v162, 0
    %v184 = vsel %vm177, %v176, 0
    %186 = vmatprep.subr.mxu0 0.0
    %187 = vmatpush1.msra.mxu0 %v42
    %188 = vmatprep.subr.mxu0 0.0
    %189 = vmatpush1.msra.mxu0 %v43
    %190 = vmatprep.subr.mxu0 0.0
    %191 = vmatpush1.msra.mxu0 %v44
    %192 = vmatprep.subr.mxu0 0.0
    %193 = vmatpush1.msra.mxu0 %v45
    %194 = vmatprep.subr.mxu0 0.0
    %195 = vmatpush1.msra.mxu0 0.0
    %196 = vmatprep.subr.mxu0 0.0
    %197 = vmatpush1.msra.mxu0 0.0
    %198 = vmatprep.subr.mxu0 0.0
    %199 = vmatpush1.msra.mxu0 0.0
    %200 = vmatprep.subr.mxu0 0.0
    %201 = vmatpush1.msra.mxu0 0.0
    %202 = vmatprep.subr.mxu0 0.0
    %203 = vmatpush1.msra.mxu0 0.0
    %204 = vmatprep.subr.mxu0 0.0
    %205 = vmatpush1.msra.mxu0 0.0
    %206 = vmatprep.subr.mxu0 0.0
    %207 = vmatpush1.msra.mxu0 0.0
    %208 = vmatprep.subr.mxu0 0.0
    %209 = vmatpush1.msra.mxu0 0.0
    %210 = vmatprep.subr.mxu0 0.0
    %211 = vmatpush1.msra.mxu0 0.0
    %212 = vmatprep.subr.mxu0 0.0
    %213 = vmatpush1.msra.mxu0 0.0
    %214 = vmatprep.subr.mxu0 0.0
    %215 = vmatpush1.msra.mxu0 0.0
    %216 = vmatprep.subr.mxu0 0.0
    %217 = vmatpush1.msra.mxu0 0.0
    %218 = vmatprep.subr.mxu0 0.0
    %219 = vmatpush1.msra.mxu0 0.0
    %220 = vmatprep.subr.mxu0 0.0
    %221 = vmatpush1.msra.mxu0 0.0
    %222 = vmatprep.subr.mxu0 0.0
    %223 = vmatpush1.msra.mxu0 0.0
    %224 = vmatprep.subr.mxu0 0.0
    %225 = vmatpush1.msra.mxu0 0.0
    %226 = vmatprep.subr.mxu0 0.0
    %227 = vmatpush1.msra.mxu0 0.0
    %228 = vmatprep.subr.mxu0 0.0
    %229 = vmatpush1.msra.mxu0 0.0
    %230 = vmatprep.subr.mxu0 0.0
    %231 = vmatpush1.msra.mxu0 0.0
    %232 = vmatprep.subr.mxu0 0.0
    %233 = vmatpush1.msra.mxu0 0.0
    %234 = vmatprep.subr.mxu0 0.0
    %235 = vmatpush1.msra.mxu0 0.0
    %236 = vmatprep.subr.mxu0 0.0
    %237 = vmatpush1.msra.mxu0 0.0
    %238 = vmatprep.subr.mxu0 0.0
    %239 = vmatpush1.msra.mxu0 0.0
    %240 = vmatprep.subr.mxu0 0.0
    %241 = vmatpush1.msra.mxu0 0.0
    %242 = vmatprep.subr.mxu0 0.0
    %243 = vmatpush1.msra.mxu0 0.0
    %244 = vmatprep.subr.mxu0 0.0
    %245 = vmatpush1.msra.mxu0 0.0
    %246 = vmatprep.subr.mxu0 0.0
    %247 = vmatpush1.msra.mxu0 0.0
    %248 = vmatprep.subr.mxu0 0.0
    %249 = vmatpush1.msra.mxu0 0.0
    %250 = vmatprep.mubr.f32.mxu0 0.0
    %251 = vmatmul.mubr.f32.gmra.mrb[0].mxu0 %v178
    %v252 = vpop.f32.mrb[0].mxu0
    %v253 = vadd.f32 0.0, %v252
    %v254 = vpop.f32.mrb[0].mxu0
    %255 = vmatprep.mubr.f32.mxu0 0.0
    %256 = vmatmul.mubr.f32.gmra.mrb[0].mxu0 %v180
    %v257 = vpop.f32.mrb[0].mxu0
    %v258 = vadd.f32 0.0, %v257
    %v259 = vpop.f32.mrb[0].mxu0
    %260 = vmatprep.mubr.f32.mxu0 0.0
    %261 = vmatmul.mubr.f32.gmra.mrb[0].mxu0 %v182
    %v262 = vpop.f32.mrb[0].mxu0
    %v263 = vadd.f32 0.0, %v262
    %v264 = vpop.f32.mrb[0].mxu0
    %265 = vmatprep.mubr.f32.mxu0 0.0
    %266 = vmatmul.mubr.f32.gmra.mrb[0].mxu0 %v184
    %v267 = vpop.f32.mrb[0].mxu0
    %v268 = vadd.f32 0.0, %v267
    %v269 = vpop.f32.mrb[0].mxu0
    %270 = vdwg.mxu0
    %v275 = vcombine.high %v253, %v253
    %v277 = vunpack.c.l.s4 1966171168
    %v278 = vunpack.c.0.s8 %v277
    %v279 = vlaneseq
    %v280 = vshrl.u32 %v279, 7
    %v281 = vsub.s32 %v278, %v280
    %v282 = vrot.slane %v253, %v281
    %v284 = vunpack.c.l.s4 1966171168
    %v285 = vunpack.c.0.s8 %v284
    %v286 = vlaneseq
    %v287 = vshrl.u32 %v286, 7
    %v288 = vsub.s32 %v285, %v287
    %v289 = vrot.slane %v275, %v288
    %v290 = vcombine.high %v282, %v282
    %v291 = vcombine.high %v289, %v289
    %v293 = vunpack.c.l.s4 1966171168
    %v294 = vunpack.c.0.s8 %v293
    %v295 = vlaneseq
    %v296 = vshrl.u32 %v295, 7
    %v297 = vsub.s32 %v294, %v296
    %v298 = vrot.slane %v282, %v297
    %v300 = vunpack.c.l.s4 1966171168
    %v301 = vunpack.c.0.s8 %v300
    %v302 = vlaneseq
    %v303 = vshrl.u32 %v302, 7
    %v304 = vsub.s32 %v301, %v303
    %v305 = vrot.slane %v289, %v304
    %v307 = vunpack.c.l.s4 1966171168
    %v308 = vunpack.c.0.s8 %v307
    %v309 = vlaneseq
    %v310 = vshrl.u32 %v309, 7
    %v311 = vsub.s32 %v308, %v310
    %v312 = vrot.slane %v290, %v311
    %v314 = vunpack.c.l.s4 1966171168
    %v315 = vunpack.c.0.s8 %v314
    %v316 = vlaneseq
    %v317 = vshrl.u32 %v316, 7
    %v318 = vsub.s32 %v315, %v317
    %v319 = vrot.slane %v291, %v318
    %v320 = vcombine.high %v298, %v298
    %v321 = vcombine.high %v305, %v305
    %v322 = vcombine.high %v312, %v312
    %v323 = vcombine.high %v319, %v319
    %v324 = vcombine.high %v258, %v258
    %v326 = vunpack.c.l.s4 1966171168
    %v327 = vunpack.c.0.s8 %v326
    %v328 = vlaneseq
    %v329 = vshrl.u32 %v328, 7
    %v330 = vsub.s32 %v327, %v329
    %v331 = vrot.slane %v258, %v330
    %v333 = vunpack.c.l.s4 1966171168
    %v334 = vunpack.c.0.s8 %v333
    %v335 = vlaneseq
    %v336 = vshrl.u32 %v335, 7
    %v337 = vsub.s32 %v334, %v336
    %v338 = vrot.slane %v324, %v337
    %v339 = vcombine.high %v331, %v331
    %v340 = vcombine.high %v338, %v338
    %v342 = vunpack.c.l.s4 1966171168
    %v343 = vunpack.c.0.s8 %v342
    %v344 = vlaneseq
    %v345 = vshrl.u32 %v344, 7
    %v346 = vsub.s32 %v343, %v345
    %v347 = vrot.slane %v331, %v346
    %v349 = vunpack.c.l.s4 1966171168
    %v350 = vunpack.c.0.s8 %v349
    %v351 = vlaneseq
    %v352 = vshrl.u32 %v351, 7
    %v353 = vsub.s32 %v350, %v352
    %v354 = vrot.slane %v338, %v353
    %v356 = vunpack.c.l.s4 1966171168
    %v357 = vunpack.c.0.s8 %v356
    %v358 = vlaneseq
    %v359 = vshrl.u32 %v358, 7
    %v360 = vsub.s32 %v357, %v359
    %v361 = vrot.slane %v339, %v360
    %v363 = vunpack.c.l.s4 1966171168
    %v364 = vunpack.c.0.s8 %v363
    %v365 = vlaneseq
    %v366 = vshrl.u32 %v365, 7
    %v367 = vsub.s32 %v364, %v366
    %v368 = vrot.slane %v340, %v367
    %v369 = vcombine.high %v347, %v347
    %v370 = vcombine.high %v354, %v354
    %v371 = vcombine.high %v361, %v361
    %v372 = vcombine.high %v368, %v368
    %v373 = vcombine.high %v263, %v263
    %v375 = vunpack.c.l.s4 1966171168
    %v376 = vunpack.c.0.s8 %v375
    %v377 = vlaneseq
    %v378 = vshrl.u32 %v377, 7
    %v379 = vsub.s32 %v376, %v378
    %v380 = vrot.slane %v263, %v379
    %v382 = vunpack.c.l.s4 1966171168
    %v383 = vunpack.c.0.s8 %v382
    %v384 = vlaneseq
    %v385 = vshrl.u32 %v384, 7
    %v386 = vsub.s32 %v383, %v385
    %v387 = vrot.slane %v373, %v386
    %v388 = vcombine.high %v380, %v380
    %v389 = vcombine.high %v387, %v387
    %v391 = vunpack.c.l.s4 1966171168
    %v392 = vunpack.c.0.s8 %v391
    %v393 = vlaneseq
    %v394 = vshrl.u32 %v393, 7
    %v395 = vsub.s32 %v392, %v394
    %v396 = vrot.slane %v380, %v395
    %v398 = vunpack.c.l.s4 1966171168
    %v399 = vunpack.c.0.s8 %v398
    %v400 = vlaneseq
    %v401 = vshrl.u32 %v400, 7
    %v402 = vsub.s32 %v399, %v401
    %v403 = vrot.slane %v387, %v402
    %v405 = vunpack.c.l.s4 1966171168
    %v406 = vunpack.c.0.s8 %v405
    %v407 = vlaneseq
    %v408 = vshrl.u32 %v407, 7
    %v409 = vsub.s32 %v406, %v408
    %v410 = vrot.slane %v388, %v409
    %v412 = vunpack.c.l.s4 1966171168
    %v413 = vunpack.c.0.s8 %v412
    %v414 = vlaneseq
    %v415 = vshrl.u32 %v414, 7
    %v416 = vsub.s32 %v413, %v415
    %v417 = vrot.slane %v389, %v416
    %v418 = vcombine.high %v396, %v396
    %v419 = vcombine.high %v403, %v403
    %v420 = vcombine.high %v410, %v410
    %v421 = vcombine.high %v417, %v417
    %v422 = vcombine.high %v268, %v268
    %v424 = vunpack.c.l.s4 1966171168
    %v425 = vunpack.c.0.s8 %v424
    %v426 = vlaneseq
    %v427 = vshrl.u32 %v426, 7
    %v428 = vsub.s32 %v425, %v427
    %v429 = vrot.slane %v268, %v428
    %v431 = vunpack.c.l.s4 1966171168
    %v432 = vunpack.c.0.s8 %v431
    %v433 = vlaneseq
    %v434 = vshrl.u32 %v433, 7
    %v435 = vsub.s32 %v432, %v434
    %v436 = vrot.slane %v422, %v435
    %v437 = vcombine.high %v429, %v429
    %v438 = vcombine.high %v436, %v436
    %v440 = vunpack.c.l.s4 1966171168
    %v441 = vunpack.c.0.s8 %v440
    %v442 = vlaneseq
    %v443 = vshrl.u32 %v442, 7
    %v444 = vsub.s32 %v441, %v443
    %v445 = vrot.slane %v429, %v444
    %v447 = vunpack.c.l.s4 1966171168
    %v448 = vunpack.c.0.s8 %v447
    %v449 = vlaneseq
    %v450 = vshrl.u32 %v449, 7
    %v451 = vsub.s32 %v448, %v450
    %v452 = vrot.slane %v436, %v451
    %v454 = vunpack.c.l.s4 1966171168
    %v455 = vunpack.c.0.s8 %v454
    %v456 = vlaneseq
    %v457 = vshrl.u32 %v456, 7
    %v458 = vsub.s32 %v455, %v457
    %v459 = vrot.slane %v437, %v458
    %v461 = vunpack.c.l.s4 1966171168
    %v462 = vunpack.c.0.s8 %v461
    %v463 = vlaneseq
    %v464 = vshrl.u32 %v463, 7
    %v465 = vsub.s32 %v462, %v464
    %v466 = vrot.slane %v438, %v465
    %v467 = vcombine.high %v445, %v445
    %v468 = vcombine.high %v452, %v452
    %v469 = vcombine.high %v459, %v459
    %v470 = vcombine.high %v466, %v466
    %v471 = vlaneseq
    %v472 = vshrl.u32 %v471, 7
    %v473 = vsub.s32 0, %v472
    %v474 = vrot.slane %v298, %v473
    %v475 = vlaneseq
    %v476 = vshrl.u32 %v475, 7
    %v477 = vsub.s32 0, %v476
    %v478 = vrot.slane %v312, %v477
    %v479 = vlaneseq
    %v480 = vshrl.u32 %v479, 7
    %v481 = vsub.s32 0, %v480
    %v482 = vrot.slane %v320, %v481
    %v483 = vlaneseq
    %v484 = vshrl.u32 %v483, 7
    %v485 = vsub.s32 0, %v484
    %v486 = vrot.slane %v322, %v485
    %v487 = vlaneseq
    %v488 = vshrl.u32 %v487, 7
    %v489 = vsub.s32 0, %v488
    %v490 = vrot.slane %v305, %v489
    %v491 = vlaneseq
    %v492 = vshrl.u32 %v491, 7
    %v493 = vsub.s32 0, %v492
    %v494 = vrot.slane %v319, %v493
    %v495 = vlaneseq
    %v496 = vshrl.u32 %v495, 7
    %v497 = vsub.s32 0, %v496
    %v498 = vrot.slane %v321, %v497
    %v499 = vlaneseq
    %v500 = vshrl.u32 %v499, 7
    %v501 = vsub.s32 0, %v500
    %v502 = vrot.slane %v323, %v501
    %v503 = vlaneseq
    %v504 = vshrl.u32 %v503, 7
    %v505 = vsub.s32 0, %v504
    %v506 = vrot.slane %v347, %v505
    %v507 = vlaneseq
    %v508 = vshrl.u32 %v507, 7
    %v509 = vsub.s32 0, %v508
    %v510 = vrot.slane %v361, %v509
    %v511 = vlaneseq
    %v512 = vshrl.u32 %v511, 7
    %v513 = vsub.s32 0, %v512
    %v514 = vrot.slane %v369, %v513
    %v515 = vlaneseq
    %v516 = vshrl.u32 %v515, 7
    %v517 = vsub.s32 0, %v516
    %v518 = vrot.slane %v371, %v517
    %v519 = vlaneseq
    %v520 = vshrl.u32 %v519, 7
    %v521 = vsub.s32 0, %v520
    %v522 = vrot.slane %v354, %v521
    %v523 = vlaneseq
    %v524 = vshrl.u32 %v523, 7
    %v525 = vsub.s32 0, %v524
    %v526 = vrot.slane %v368, %v525
    %v527 = vlaneseq
    %v528 = vshrl.u32 %v527, 7
    %v529 = vsub.s32 0, %v528
    %v530 = vrot.slane %v370, %v529
    %v531 = vlaneseq
    %v532 = vshrl.u32 %v531, 7
    %v533 = vsub.s32 0, %v532
    %v534 = vrot.slane %v372, %v533
    %v535 = vlaneseq
    %v536 = vshrl.u32 %v535, 7
    %v537 = vsub.s32 0, %v536
    %v538 = vrot.slane %v396, %v537
    %v539 = vlaneseq
    %v540 = vshrl.u32 %v539, 7
    %v541 = vsub.s32 0, %v540
    %v542 = vrot.slane %v410, %v541
    %v543 = vlaneseq
    %v544 = vshrl.u32 %v543, 7
    %v545 = vsub.s32 0, %v544
    %v546 = vrot.slane %v418, %v545
    %v547 = vlaneseq
    %v548 = vshrl.u32 %v547, 7
    %v549 = vsub.s32 0, %v548
    %v550 = vrot.slane %v420, %v549
    %v551 = vlaneseq
    %v552 = vshrl.u32 %v551, 7
    %v553 = vsub.s32 0, %v552
    %v554 = vrot.slane %v403, %v553
    %v555 = vlaneseq
    %v556 = vshrl.u32 %v555, 7
    %v557 = vsub.s32 0, %v556
    %v558 = vrot.slane %v417, %v557
    %v559 = vlaneseq
    %v560 = vshrl.u32 %v559, 7
    %v561 = vsub.s32 0, %v560
    %v562 = vrot.slane %v419, %v561
    %v563 = vlaneseq
    %v564 = vshrl.u32 %v563, 7
    %v565 = vsub.s32 0, %v564
    %v566 = vrot.slane %v421, %v565
    %v567 = vlaneseq
    %v568 = vshrl.u32 %v567, 7
    %v569 = vsub.s32 0, %v568
    %v570 = vrot.slane %v445, %v569
    %v571 = vlaneseq
    %v572 = vshrl.u32 %v571, 7
    %v573 = vsub.s32 0, %v572
    %v574 = vrot.slane %v459, %v573
    %v575 = vlaneseq
    %v576 = vshrl.u32 %v575, 7
    %v577 = vsub.s32 0, %v576
    %v578 = vrot.slane %v467, %v577
    %v579 = vlaneseq
    %v580 = vshrl.u32 %v579, 7
    %v581 = vsub.s32 0, %v580
    %v582 = vrot.slane %v469, %v581
    %v583 = vlaneseq
    %v584 = vshrl.u32 %v583, 7
    %v585 = vsub.s32 0, %v584
    %v586 = vrot.slane %v452, %v585
    %v587 = vlaneseq
    %v588 = vshrl.u32 %v587, 7
    %v589 = vsub.s32 0, %v588
    %v590 = vrot.slane %v466, %v589
    %v591 = vlaneseq
    %v592 = vshrl.u32 %v591, 7
    %v593 = vsub.s32 0, %v592
    %v594 = vrot.slane %v468, %v593
    %v595 = vlaneseq
    %v596 = vshrl.u32 %v595, 7
    %v597 = vsub.s32 0, %v596
    %v598 = vrot.slane %v470, %v597
    %v631 = vmul.f32 %v50, %v474
    %v632 = vmul.f32 %v51, %v478
    %v633 = vmul.f32 %v52, %v482
    %v634 = vmul.f32 %v53, %v486
    %v635 = vmul.f32 %v54, %v490
    %v636 = vmul.f32 %v55, %v494
    %v637 = vmul.f32 %v56, %v498
    %v638 = vmul.f32 %v57, %v502
    %v639 = vmul.f32 %v58, %v506
    %v640 = vmul.f32 %v59, %v510
    %v641 = vmul.f32 %v60, %v514
    %v642 = vmul.f32 %v61, %v518
    %v643 = vmul.f32 %v62, %v522
    %v644 = vmul.f32 %v63, %v526
    %v645 = vmul.f32 %v64, %v530
    %v646 = vmul.f32 %v65, %v534
    %v647 = vmul.f32 %v66, %v538
    %v648 = vmul.f32 %v67, %v542
    %v649 = vmul.f32 %v68, %v546
    %v650 = vmul.f32 %v69, %v550
    %v651 = vmul.f32 %v70, %v554
    %v652 = vmul.f32 %v71, %v558
    %v653 = vmul.f32 %v72, %v562
    %v654 = vmul.f32 %v73, %v566
    %v655 = vmul.f32 %v74, %v570
    %v656 = vmul.f32 %v75, %v574
    %v657 = vmul.f32 %v76, %v578
    %v658 = vmul.f32 %v77, %v582
    %v659 = vmul.f32 %v78, %v586
    %v660 = vmul.f32 %v79, %v590
    %v661 = vmul.f32 %v80, %v594
    %v662 = vmul.f32 %v81, %v598
    %v663 = vsel %vm177, %v631, 0.0
    %664 = vadd.xlane.f32.xlu0 %v663
    %v665 = vpop.xlane.xlu0 %664
    %v666 = vsel %vm177, %v632, 0.0
    %667 = vadd.xlane.f32.xlu0 %v666
    %v668 = vpop.xlane.xlu0 %667
    %v669 = vsel %vm177, %v633, 0.0
    %670 = vadd.xlane.f32.xlu0 %v669
    %v671 = vpop.xlane.xlu0 %670
    %v672 = vsel %vm177, %v634, 0.0
    %673 = vadd.xlane.f32.xlu0 %v672
    %v674 = vpop.xlane.xlu0 %673
    %v675 = vsel %vm177, %v635, 0.0
    %676 = vadd.xlane.f32.xlu0 %v675
    %v677 = vpop.xlane.xlu0 %676
    %v678 = vsel %vm177, %v636, 0.0
    %679 = vadd.xlane.f32.xlu0 %v678
    %v680 = vpop.xlane.xlu0 %679
    %v681 = vsel %vm177, %v637, 0.0
    %682 = vadd.xlane.f32.xlu0 %v681
    %v683 = vpop.xlane.xlu0 %682
    %v684 = vsel %vm177, %v638, 0.0
    %685 = vadd.xlane.f32.xlu0 %v684
    %v686 = vpop.xlane.xlu0 %685
    %v687 = vsel %vm177, %v639, 0.0
    %688 = vadd.xlane.f32.xlu0 %v687
    %v689 = vpop.xlane.xlu0 %688
    %v690 = vsel %vm177, %v640, 0.0
    %691 = vadd.xlane.f32.xlu0 %v690
    %v692 = vpop.xlane.xlu0 %691
    %v693 = vsel %vm177, %v641, 0.0
    %694 = vadd.xlane.f32.xlu0 %v693
    %v695 = vpop.xlane.xlu0 %694
    %v696 = vsel %vm177, %v642, 0.0
    %697 = vadd.xlane.f32.xlu0 %v696
    %v698 = vpop.xlane.xlu0 %697
    %v699 = vsel %vm177, %v643, 0.0
    %700 = vadd.xlane.f32.xlu0 %v699
    %v701 = vpop.xlane.xlu0 %700
    %v702 = vsel %vm177, %v644, 0.0
    %703 = vadd.xlane.f32.xlu0 %v702
    %v704 = vpop.xlane.xlu0 %703
    %v705 = vsel %vm177, %v645, 0.0
    %706 = vadd.xlane.f32.xlu0 %v705
    %v707 = vpop.xlane.xlu0 %706
    %v708 = vsel %vm177, %v646, 0.0
    %709 = vadd.xlane.f32.xlu0 %v708
    %v710 = vpop.xlane.xlu0 %709
    %v711 = vsel %vm177, %v647, 0.0
    %712 = vadd.xlane.f32.xlu0 %v711
    %v713 = vpop.xlane.xlu0 %712
    %v714 = vsel %vm177, %v648, 0.0
    %715 = vadd.xlane.f32.xlu0 %v714
    %v716 = vpop.xlane.xlu0 %715
    %v717 = vsel %vm177, %v649, 0.0
    %718 = vadd.xlane.f32.xlu0 %v717
    %v719 = vpop.xlane.xlu0 %718
    %v720 = vsel %vm177, %v650, 0.0
    %721 = vadd.xlane.f32.xlu0 %v720
    %v722 = vpop.xlane.xlu0 %721
    %v723 = vsel %vm177, %v651, 0.0
    %724 = vadd.xlane.f32.xlu0 %v723
    %v725 = vpop.xlane.xlu0 %724
    %v726 = vsel %vm177, %v652, 0.0
    %727 = vadd.xlane.f32.xlu0 %v726
    %v728 = vpop.xlane.xlu0 %727
    %v729 = vsel %vm177, %v653, 0.0
    %730 = vadd.xlane.f32.xlu0 %v729
    %v731 = vpop.xlane.xlu0 %730
    %v732 = vsel %vm177, %v654, 0.0
    %733 = vadd.xlane.f32.xlu0 %v732
    %v734 = vpop.xlane.xlu0 %733
    %v735 = vsel %vm177, %v655, 0.0
    %736 = vadd.xlane.f32.xlu0 %v735
    %v737 = vpop.xlane.xlu0 %736
    %v738 = vsel %vm177, %v656, 0.0
    %739 = vadd.xlane.f32.xlu0 %v738
    %v740 = vpop.xlane.xlu0 %739
    %v741 = vsel %vm177, %v657, 0.0
    %742 = vadd.xlane.f32.xlu0 %v741
    %v743 = vpop.xlane.xlu0 %742
    %v744 = vsel %vm177, %v658, 0.0
    %745 = vadd.xlane.f32.xlu0 %v744
    %v746 = vpop.xlane.xlu0 %745
    %v747 = vsel %vm177, %v659, 0.0
    %748 = vadd.xlane.f32.xlu0 %v747
    %v749 = vpop.xlane.xlu0 %748
    %v750 = vsel %vm177, %v660, 0.0
    %751 = vadd.xlane.f32.xlu0 %v750
    %v752 = vpop.xlane.xlu0 %751
    %v753 = vsel %vm177, %v661, 0.0
    %754 = vadd.xlane.f32.xlu0 %v753
    %v755 = vpop.xlane.xlu0 %754
    %v756 = vsel %vm177, %v662, 0.0
    %757 = vadd.xlane.f32.xlu0 %v756
    %v758 = vpop.xlane.xlu0 %757
    %v760 = vlaneseq
    %v761 = vshrl.u32 %v760, 7
    %v762 = vsub.s32 0, %v761
    %v763 = vrot.slane %v46, %v762
    %v765 = vmul.f32 %v50, %v763
    %v766 = vmul.f32 %v51, %v763
    %v767 = vmul.f32 %v52, %v763
    %v768 = vmul.f32 %v53, %v763
    %v769 = vmul.f32 %v54, %v763
    %v770 = vmul.f32 %v55, %v763
    %v771 = vmul.f32 %v56, %v763
    %v772 = vmul.f32 %v57, %v763
    %v773 = vmul.f32 %v58, %v763
    %v774 = vmul.f32 %v59, %v763
    %v775 = vmul.f32 %v60, %v763
    %v776 = vmul.f32 %v61, %v763
    %v777 = vmul.f32 %v62, %v763
    %v778 = vmul.f32 %v63, %v763
    %v779 = vmul.f32 %v64, %v763
    %v780 = vmul.f32 %v65, %v763
    %v781 = vmul.f32 %v66, %v763
    %v782 = vmul.f32 %v67, %v763
    %v783 = vmul.f32 %v68, %v763
    %v784 = vmul.f32 %v69, %v763
    %v785 = vmul.f32 %v70, %v763
    %v786 = vmul.f32 %v71, %v763
    %v787 = vmul.f32 %v72, %v763
    %v788 = vmul.f32 %v73, %v763
    %v789 = vmul.f32 %v74, %v763
    %v790 = vmul.f32 %v75, %v763
    %v791 = vmul.f32 %v76, %v763
    %v792 = vmul.f32 %v77, %v763
    %v793 = vmul.f32 %v78, %v763
    %v794 = vmul.f32 %v79, %v763
    %v795 = vmul.f32 %v80, %v763
    %v796 = vmul.f32 %v81, %v763
    %v797 = vsel %vm177, %v765, 0.0
    %798 = vadd.xlane.f32.xlu0 %v797
    %v799 = vpop.xlane.xlu0 %798
    %v800 = vsel %vm177, %v766, 0.0
    %801 = vadd.xlane.f32.xlu0 %v800
    %v802 = vpop.xlane.xlu0 %801
    %v803 = vsel %vm177, %v767, 0.0
    %804 = vadd.xlane.f32.xlu0 %v803
    %v805 = vpop.xlane.xlu0 %804
    %v806 = vsel %vm177, %v768, 0.0
    %807 = vadd.xlane.f32.xlu0 %v806
    %v808 = vpop.xlane.xlu0 %807
    %v809 = vsel %vm177, %v769, 0.0
    %810 = vadd.xlane.f32.xlu0 %v809
    %v811 = vpop.xlane.xlu0 %810
    %v812 = vsel %vm177, %v770, 0.0
    %813 = vadd.xlane.f32.xlu0 %v812
    %v814 = vpop.xlane.xlu0 %813
    %v815 = vsel %vm177, %v771, 0.0
    %816 = vadd.xlane.f32.xlu0 %v815
    %v817 = vpop.xlane.xlu0 %816
    %v818 = vsel %vm177, %v772, 0.0
    %819 = vadd.xlane.f32.xlu0 %v818
    %v820 = vpop.xlane.xlu0 %819
    %v821 = vsel %vm177, %v773, 0.0
    %822 = vadd.xlane.f32.xlu0 %v821
    %v823 = vpop.xlane.xlu0 %822
    %v824 = vsel %vm177, %v774, 0.0
    %825 = vadd.xlane.f32.xlu0 %v824
    %v826 = vpop.xlane.xlu0 %825
    %v827 = vsel %vm177, %v775, 0.0
    %828 = vadd.xlane.f32.xlu0 %v827
    %v829 = vpop.xlane.xlu0 %828
    %v830 = vsel %vm177, %v776, 0.0
    %831 = vadd.xlane.f32.xlu0 %v830
    %v832 = vpop.xlane.xlu0 %831
    %v833 = vsel %vm177, %v777, 0.0
    %834 = vadd.xlane.f32.xlu0 %v833
    %v835 = vpop.xlane.xlu0 %834
    %v836 = vsel %vm177, %v778, 0.0
    %837 = vadd.xlane.f32.xlu0 %v836
    %v838 = vpop.xlane.xlu0 %837
    %v839 = vsel %vm177, %v779, 0.0
    %840 = vadd.xlane.f32.xlu0 %v839
    %v841 = vpop.xlane.xlu0 %840
    %v842 = vsel %vm177, %v780, 0.0
    %843 = vadd.xlane.f32.xlu0 %v842
    %v844 = vpop.xlane.xlu0 %843
    %v845 = vsel %vm177, %v781, 0.0
    %846 = vadd.xlane.f32.xlu0 %v845
    %v847 = vpop.xlane.xlu0 %846
    %v848 = vsel %vm177, %v782, 0.0
    %849 = vadd.xlane.f32.xlu0 %v848
    %v850 = vpop.xlane.xlu0 %849
    %v851 = vsel %vm177, %v783, 0.0
    %852 = vadd.xlane.f32.xlu0 %v851
    %v853 = vpop.xlane.xlu0 %852
    %v854 = vsel %vm177, %v784, 0.0
    %855 = vadd.xlane.f32.xlu0 %v854
    %v856 = vpop.xlane.xlu0 %855
    %v857 = vsel %vm177, %v785, 0.0
    %858 = vadd.xlane.f32.xlu0 %v857
    %v859 = vpop.xlane.xlu0 %858
    %v860 = vsel %vm177, %v786, 0.0
    %861 = vadd.xlane.f32.xlu0 %v860
    %v862 = vpop.xlane.xlu0 %861
    %v863 = vsel %vm177, %v787, 0.0
    %864 = vadd.xlane.f32.xlu0 %v863
    %v865 = vpop.xlane.xlu0 %864
    %v866 = vsel %vm177, %v788, 0.0
    %867 = vadd.xlane.f32.xlu0 %v866
    %v868 = vpop.xlane.xlu0 %867
    %v869 = vsel %vm177, %v789, 0.0
    %870 = vadd.xlane.f32.xlu0 %v869
    %v871 = vpop.xlane.xlu0 %870
    %v872 = vsel %vm177, %v790, 0.0
    %873 = vadd.xlane.f32.xlu0 %v872
    %v874 = vpop.xlane.xlu0 %873
    %v875 = vsel %vm177, %v791, 0.0
    %876 = vadd.xlane.f32.xlu0 %v875
    %v877 = vpop.xlane.xlu0 %876
    %v878 = vsel %vm177, %v792, 0.0
    %879 = vadd.xlane.f32.xlu0 %v878
    %v880 = vpop.xlane.xlu0 %879
    %v881 = vsel %vm177, %v793, 0.0
    %882 = vadd.xlane.f32.xlu0 %v881
    %v883 = vpop.xlane.xlu0 %882
    %v884 = vsel %vm177, %v794, 0.0
    %885 = vadd.xlane.f32.xlu0 %v884
    %v886 = vpop.xlane.xlu0 %885
    %v887 = vsel %vm177, %v795, 0.0
    %888 = vadd.xlane.f32.xlu0 %v887
    %v889 = vpop.xlane.xlu0 %888
    %v890 = vsel %vm177, %v796, 0.0
    %891 = vadd.xlane.f32.xlu0 %v890
    %v892 = vpop.xlane.xlu0 %891
    %v925 = vlaneseq
    %v926 = vand.u32 %v925, 127
    %v927 = vlaneseq
    %v928 = vshrl.u32 %v927, 7
    %v929 = vsub.s32 %v926, %v928
    %v930 = vrot.slane %v665, %v929
    %v931 = vlaneseq
    %v932 = vshrl.u32 %v931, 7
    %v933 = vsub.s32 %v926, %v932
    %v934 = vrot.slane %v668, %v933
    %v935 = vlaneseq
    %v936 = vshrl.u32 %v935, 7
    %v937 = vsub.s32 %v926, %v936
    %v938 = vrot.slane %v671, %v937
    %v939 = vlaneseq
    %v940 = vshrl.u32 %v939, 7
    %v941 = vsub.s32 %v926, %v940
    %v942 = vrot.slane %v674, %v941
    %v943 = vlaneseq
    %v944 = vshrl.u32 %v943, 7
    %v945 = vsub.s32 %v926, %v944
    %v946 = vrot.slane %v677, %v945
    %v947 = vlaneseq
    %v948 = vshrl.u32 %v947, 7
    %v949 = vsub.s32 %v926, %v948
    %v950 = vrot.slane %v680, %v949
    %v951 = vlaneseq
    %v952 = vshrl.u32 %v951, 7
    %v953 = vsub.s32 %v926, %v952
    %v954 = vrot.slane %v683, %v953
    %v955 = vlaneseq
    %v956 = vshrl.u32 %v955, 7
    %v957 = vsub.s32 %v926, %v956
    %v958 = vrot.slane %v686, %v957
    %v959 = vlaneseq
    %v960 = vshrl.u32 %v959, 7
    %v961 = vsub.s32 %v926, %v960
    %v962 = vrot.slane %v689, %v961
    %v963 = vlaneseq
    %v964 = vshrl.u32 %v963, 7
    %v965 = vsub.s32 %v926, %v964
    %v966 = vrot.slane %v692, %v965
    %v967 = vlaneseq
    %v968 = vshrl.u32 %v967, 7
    %v969 = vsub.s32 %v926, %v968
    %v970 = vrot.slane %v695, %v969
    %v971 = vlaneseq
    %v972 = vshrl.u32 %v971, 7
    %v973 = vsub.s32 %v926, %v972
    %v974 = vrot.slane %v698, %v973
    %v975 = vlaneseq
    %v976 = vshrl.u32 %v975, 7
    %v977 = vsub.s32 %v926, %v976
    %v978 = vrot.slane %v701, %v977
    %v979 = vlaneseq
    %v980 = vshrl.u32 %v979, 7
    %v981 = vsub.s32 %v926, %v980
    %v982 = vrot.slane %v704, %v981
    %v983 = vlaneseq
    %v984 = vshrl.u32 %v983, 7
    %v985 = vsub.s32 %v926, %v984
    %v986 = vrot.slane %v707, %v985
    %v987 = vlaneseq
    %v988 = vshrl.u32 %v987, 7
    %v989 = vsub.s32 %v926, %v988
    %v990 = vrot.slane %v710, %v989
    %v991 = vlaneseq
    %v992 = vshrl.u32 %v991, 7
    %v993 = vsub.s32 %v926, %v992
    %v994 = vrot.slane %v713, %v993
    %v995 = vlaneseq
    %v996 = vshrl.u32 %v995, 7
    %v997 = vsub.s32 %v926, %v996
    %v998 = vrot.slane %v716, %v997
    %v999 = vlaneseq
    %v1000 = vshrl.u32 %v999, 7
    %v1001 = vsub.s32 %v926, %v1000
    %v1002 = vrot.slane %v719, %v1001
    %v1003 = vlaneseq
    %v1004 = vshrl.u32 %v1003, 7
    %v1005 = vsub.s32 %v926, %v1004
    %v1006 = vrot.slane %v722, %v1005
    %v1007 = vlaneseq
    %v1008 = vshrl.u32 %v1007, 7
    %v1009 = vsub.s32 %v926, %v1008
    %v1010 = vrot.slane %v725, %v1009
    %v1011 = vlaneseq
    %v1012 = vshrl.u32 %v1011, 7
    %v1013 = vsub.s32 %v926, %v1012
    %v1014 = vrot.slane %v728, %v1013
    %v1015 = vlaneseq
    %v1016 = vshrl.u32 %v1015, 7
    %v1017 = vsub.s32 %v926, %v1016
    %v1018 = vrot.slane %v731, %v1017
    %v1019 = vlaneseq
    %v1020 = vshrl.u32 %v1019, 7
    %v1021 = vsub.s32 %v926, %v1020
    %v1022 = vrot.slane %v734, %v1021
    %v1023 = vlaneseq
    %v1024 = vshrl.u32 %v1023, 7
    %v1025 = vsub.s32 %v926, %v1024
    %v1026 = vrot.slane %v737, %v1025
    %v1027 = vlaneseq
    %v1028 = vshrl.u32 %v1027, 7
    %v1029 = vsub.s32 %v926, %v1028
    %v1030 = vrot.slane %v740, %v1029
    %v1031 = vlaneseq
    %v1032 = vshrl.u32 %v1031, 7
    %v1033 = vsub.s32 %v926, %v1032
    %v1034 = vrot.slane %v743, %v1033
    %v1035 = vlaneseq
    %v1036 = vshrl.u32 %v1035, 7
    %v1037 = vsub.s32 %v926, %v1036
    %v1038 = vrot.slane %v746, %v1037
    %v1039 = vlaneseq
    %v1040 = vshrl.u32 %v1039, 7
    %v1041 = vsub.s32 %v926, %v1040
    %v1042 = vrot.slane %v749, %v1041
    %v1043 = vlaneseq
    %v1044 = vshrl.u32 %v1043, 7
    %v1045 = vsub.s32 %v926, %v1044
    %v1046 = vrot.slane %v752, %v1045
    %v1047 = vlaneseq
    %v1048 = vshrl.u32 %v1047, 7
    %v1049 = vsub.s32 %v926, %v1048
    %v1050 = vrot.slane %v755, %v1049
    %v1051 = vlaneseq
    %v1052 = vshrl.u32 %v1051, 7
    %v1053 = vsub.s32 %v926, %v1052
    %v1054 = vrot.slane %v758, %v1053
    %v1055 = vsel %vm116, %v934, %v930
    %v1056 = vsel %vm119, %v938, %v1055
    %v1057 = vsel %vm122, %v942, %v1056
    %v1058 = vsel %vm125, %v946, %v1057
    %v1059 = vsel %vm128, %v950, %v1058
    %v1060 = vsel %vm131, %v954, %v1059
    %v1061 = vsel %vm133, %v958, %v1060
    %v1062 = vsel %vm116, %v966, %v962
    %v1063 = vsel %vm119, %v970, %v1062
    %v1064 = vsel %vm122, %v974, %v1063
    %v1065 = vsel %vm125, %v978, %v1064
    %v1066 = vsel %vm128, %v982, %v1065
    %v1067 = vsel %vm131, %v986, %v1066
    %v1068 = vsel %vm133, %v990, %v1067
    %v1069 = vsel %vm116, %v998, %v994
    %v1070 = vsel %vm119, %v1002, %v1069
    %v1071 = vsel %vm122, %v1006, %v1070
    %v1072 = vsel %vm125, %v1010, %v1071
    %v1073 = vsel %vm128, %v1014, %v1072
    %v1074 = vsel %vm131, %v1018, %v1073
    %v1075 = vsel %vm133, %v1022, %v1074
    %v1076 = vsel %vm116, %v1030, %v1026
    %v1077 = vsel %vm119, %v1034, %v1076
    %v1078 = vsel %vm122, %v1038, %v1077
    %v1079 = vsel %vm125, %v1042, %v1078
    %v1080 = vsel %vm128, %v1046, %v1079
    %v1081 = vsel %vm131, %v1050, %v1080
    %v1082 = vsel %vm133, %v1054, %v1081
    %vm1087 = vcmask 64512
    %v1088 = vsel %vm1087, %v1061, -inf
    %1089 = vmax.xlane.f32.xlu0 %v1088
    %v1090 = vpop.xlane.xlu0 %1089
    %v1091 = vsel %vm1087, %v1068, -inf
    %1092 = vmax.xlane.f32.xlu0 %v1091
    %v1093 = vpop.xlane.xlu0 %1092
    %v1094 = vsel %vm1087, %v1075, -inf
    %1095 = vmax.xlane.f32.xlu0 %v1094
    %v1096 = vpop.xlane.xlu0 %1095
    %v1097 = vsel %vm1087, %v1082, -inf
    %1098 = vmax.xlane.f32.xlu0 %v1097
    %v1099 = vpop.xlane.xlu0 %1098
    %v1104 = vlaneseq
    %v1105 = vshrl.u32 %v1104, 7
    %v1106 = vsub.s32 0, %v1105
    %v1107 = vrot.slane %v1090, %v1106
    %v1108 = vlaneseq
    %v1109 = vshrl.u32 %v1108, 7
    %v1110 = vsub.s32 1, %v1109
    %v1111 = vrot.slane %v1090, %v1110
    %v1112 = vlaneseq
    %v1113 = vshrl.u32 %v1112, 7
    %v1114 = vsub.s32 2, %v1113
    %v1115 = vrot.slane %v1090, %v1114
    %v1116 = vlaneseq
    %v1117 = vshrl.u32 %v1116, 7
    %v1118 = vsub.s32 3, %v1117
    %v1119 = vrot.slane %v1090, %v1118
    %v1120 = vlaneseq
    %v1121 = vshrl.u32 %v1120, 7
    %v1122 = vsub.s32 4, %v1121
    %v1123 = vrot.slane %v1090, %v1122
    %v1124 = vlaneseq
    %v1125 = vshrl.u32 %v1124, 7
    %v1126 = vsub.s32 5, %v1125
    %v1127 = vrot.slane %v1090, %v1126
    %v1128 = vlaneseq
    %v1129 = vshrl.u32 %v1128, 7
    %v1130 = vsub.s32 6, %v1129
    %v1131 = vrot.slane %v1090, %v1130
    %v1132 = vlaneseq
    %v1133 = vshrl.u32 %v1132, 7
    %v1134 = vsub.s32 7, %v1133
    %v1135 = vrot.slane %v1090, %v1134
    %v1136 = vlaneseq
    %v1137 = vshrl.u32 %v1136, 7
    %v1138 = vsub.s32 0, %v1137
    %v1139 = vrot.slane %v1093, %v1138
    %v1140 = vlaneseq
    %v1141 = vshrl.u32 %v1140, 7
    %v1142 = vsub.s32 1, %v1141
    %v1143 = vrot.slane %v1093, %v1142
    %v1144 = vlaneseq
    %v1145 = vshrl.u32 %v1144, 7
    %v1146 = vsub.s32 2, %v1145
    %v1147 = vrot.slane %v1093, %v1146
    %v1148 = vlaneseq
    %v1149 = vshrl.u32 %v1148, 7
    %v1150 = vsub.s32 3, %v1149
    %v1151 = vrot.slane %v1093, %v1150
    %v1152 = vlaneseq
    %v1153 = vshrl.u32 %v1152, 7
    %v1154 = vsub.s32 4, %v1153
    %v1155 = vrot.slane %v1093, %v1154
    %v1156 = vlaneseq
    %v1157 = vshrl.u32 %v1156, 7
    %v1158 = vsub.s32 5, %v1157
    %v1159 = vrot.slane %v1093, %v1158
    %v1160 = vlaneseq
    %v1161 = vshrl.u32 %v1160, 7
    %v1162 = vsub.s32 6, %v1161
    %v1163 = vrot.slane %v1093, %v1162
    %v1164 = vlaneseq
    %v1165 = vshrl.u32 %v1164, 7
    %v1166 = vsub.s32 7, %v1165
    %v1167 = vrot.slane %v1093, %v1166
    %v1168 = vlaneseq
    %v1169 = vshrl.u32 %v1168, 7
    %v1170 = vsub.s32 0, %v1169
    %v1171 = vrot.slane %v1096, %v1170
    %v1172 = vlaneseq
    %v1173 = vshrl.u32 %v1172, 7
    %v1174 = vsub.s32 1, %v1173
    %v1175 = vrot.slane %v1096, %v1174
    %v1176 = vlaneseq
    %v1177 = vshrl.u32 %v1176, 7
    %v1178 = vsub.s32 2, %v1177
    %v1179 = vrot.slane %v1096, %v1178
    %v1180 = vlaneseq
    %v1181 = vshrl.u32 %v1180, 7
    %v1182 = vsub.s32 3, %v1181
    %v1183 = vrot.slane %v1096, %v1182
    %v1184 = vlaneseq
    %v1185 = vshrl.u32 %v1184, 7
    %v1186 = vsub.s32 4, %v1185
    %v1187 = vrot.slane %v1096, %v1186
    %v1188 = vlaneseq
    %v1189 = vshrl.u32 %v1188, 7
    %v1190 = vsub.s32 5, %v1189
    %v1191 = vrot.slane %v1096, %v1190
    %v1192 = vlaneseq
    %v1193 = vshrl.u32 %v1192, 7
    %v1194 = vsub.s32 6, %v1193
    %v1195 = vrot.slane %v1096, %v1194
    %v1196 = vlaneseq
    %v1197 = vshrl.u32 %v1196, 7
    %v1198 = vsub.s32 7, %v1197
    %v1199 = vrot.slane %v1096, %v1198
    %v1200 = vlaneseq
    %v1201 = vshrl.u32 %v1200, 7
    %v1202 = vsub.s32 0, %v1201
    %v1203 = vrot.slane %v1099, %v1202
    %v1204 = vlaneseq
    %v1205 = vshrl.u32 %v1204, 7
    %v1206 = vsub.s32 1, %v1205
    %v1207 = vrot.slane %v1099, %v1206
    %v1208 = vlaneseq
    %v1209 = vshrl.u32 %v1208, 7
    %v1210 = vsub.s32 2, %v1209
    %v1211 = vrot.slane %v1099, %v1210
    %v1212 = vlaneseq
    %v1213 = vshrl.u32 %v1212, 7
    %v1214 = vsub.s32 3, %v1213
    %v1215 = vrot.slane %v1099, %v1214
    %v1216 = vlaneseq
    %v1217 = vshrl.u32 %v1216, 7
    %v1218 = vsub.s32 4, %v1217
    %v1219 = vrot.slane %v1099, %v1218
    %v1220 = vlaneseq
    %v1221 = vshrl.u32 %v1220, 7
    %v1222 = vsub.s32 5, %v1221
    %v1223 = vrot.slane %v1099, %v1222
    %v1224 = vlaneseq
    %v1225 = vshrl.u32 %v1224, 7
    %v1226 = vsub.s32 6, %v1225
    %v1227 = vrot.slane %v1099, %v1226
    %v1228 = vlaneseq
    %v1229 = vshrl.u32 %v1228, 7
    %v1230 = vsub.s32 7, %v1229
    %v1231 = vrot.slane %v1099, %v1230
    %v1264 = vsub.f32 %v665, %v1107
    %v1265 = vsub.f32 %v668, %v1111
    %v1266 = vsub.f32 %v671, %v1115
    %v1267 = vsub.f32 %v674, %v1119
    %v1268 = vsub.f32 %v677, %v1123
    %v1269 = vsub.f32 %v680, %v1127
    %v1270 = vsub.f32 %v683, %v1131
    %v1271 = vsub.f32 %v686, %v1135
    %v1272 = vsub.f32 %v689, %v1139
    %v1273 = vsub.f32 %v692, %v1143
    %v1274 = vsub.f32 %v695, %v1147
    %v1275 = vsub.f32 %v698, %v1151
    %v1276 = vsub.f32 %v701, %v1155
    %v1277 = vsub.f32 %v704, %v1159
    %v1278 = vsub.f32 %v707, %v1163
    %v1279 = vsub.f32 %v710, %v1167
    %v1280 = vsub.f32 %v713, %v1171
    %v1281 = vsub.f32 %v716, %v1175
    %v1282 = vsub.f32 %v719, %v1179
    %v1283 = vsub.f32 %v722, %v1183
    %v1284 = vsub.f32 %v725, %v1187
    %v1285 = vsub.f32 %v728, %v1191
    %v1286 = vsub.f32 %v731, %v1195
    %v1287 = vsub.f32 %v734, %v1199
    %v1288 = vsub.f32 %v737, %v1203
    %v1289 = vsub.f32 %v740, %v1207
    %v1290 = vsub.f32 %v743, %v1211
    %v1291 = vsub.f32 %v746, %v1215
    %v1292 = vsub.f32 %v749, %v1219
    %v1293 = vsub.f32 %v752, %v1223
    %v1294 = vsub.f32 %v755, %v1227
    %v1295 = vsub.f32 %v758, %v1231
    %v1296 = vmul.f32 %v1264, 1.442695
    %v1297 = vpow.pop %v1296
    %v1298 = vmul.f32 %v1265, 1.442695
    %v1299 = vpow.pop %v1298
    %v1300 = vmul.f32 %v1266, 1.442695
    %v1301 = vpow.pop %v1300
    %v1302 = vmul.f32 %v1267, 1.442695
    %v1303 = vpow.pop %v1302
    %v1304 = vmul.f32 %v1268, 1.442695
    %v1305 = vpow.pop %v1304
    %v1306 = vmul.f32 %v1269, 1.442695
    %v1307 = vpow.pop %v1306
    %v1308 = vmul.f32 %v1270, 1.442695
    %v1309 = vpow.pop %v1308
    %v1310 = vmul.f32 %v1271, 1.442695
    %v1311 = vpow.pop %v1310
    %v1312 = vmul.f32 %v1272, 1.442695
    %v1313 = vpow.pop %v1312
    %v1314 = vmul.f32 %v1273, 1.442695
    %v1315 = vpow.pop %v1314
    %v1316 = vmul.f32 %v1274, 1.442695
    %v1317 = vpow.pop %v1316
    %v1318 = vmul.f32 %v1275, 1.442695
    %v1319 = vpow.pop %v1318
    %v1320 = vmul.f32 %v1276, 1.442695
    %v1321 = vpow.pop %v1320
    %v1322 = vmul.f32 %v1277, 1.442695
    %v1323 = vpow.pop %v1322
    %v1324 = vmul.f32 %v1278, 1.442695
    %v1325 = vpow.pop %v1324
    %v1326 = vmul.f32 %v1279, 1.442695
    %v1327 = vpow.pop %v1326
    %v1328 = vmul.f32 %v1280, 1.442695
    %v1329 = vpow.pop %v1328
    %v1330 = vmul.f32 %v1281, 1.442695
    %v1331 = vpow.pop %v1330
    %v1332 = vmul.f32 %v1282, 1.442695
    %v1333 = vpow.pop %v1332
    %v1334 = vmul.f32 %v1283, 1.442695
    %v1335 = vpow.pop %v1334
    %v1336 = vmul.f32 %v1284, 1.442695
    %v1337 = vpow.pop %v1336
    %v1338 = vmul.f32 %v1285, 1.442695
    %v1339 = vpow.pop %v1338
    %v1340 = vmul.f32 %v1286, 1.442695
    %v1341 = vpow.pop %v1340
    %v1342 = vmul.f32 %v1287, 1.442695
    %v1343 = vpow.pop %v1342
    %v1344 = vmul.f32 %v1288, 1.442695
    %v1345 = vpow.pop %v1344
    %v1346 = vmul.f32 %v1289, 1.442695
    %v1347 = vpow.pop %v1346
    %v1348 = vmul.f32 %v1290, 1.442695
    %v1349 = vpow.pop %v1348
    %v1350 = vmul.f32 %v1291, 1.442695
    %v1351 = vpow.pop %v1350
    %v1352 = vmul.f32 %v1292, 1.442695
    %v1353 = vpow.pop %v1352
    %v1354 = vmul.f32 %v1293, 1.442695
    %v1355 = vpow.pop %v1354
    %v1356 = vmul.f32 %v1294, 1.442695
    %v1357 = vpow.pop %v1356
    %v1358 = vmul.f32 %v1295, 1.442695
    %v1359 = vpow.pop %v1358
    %1392 = vset.pattern.permute.xlu0 0
    %1393 = vperm.xlu0 %1392, %v1297
    %v1394 = vpop.permute.xlu0 %1393
    %1395 = vset.pattern.permute.xlu0 0
    %1396 = vperm.xlu0 %1395, %v1299
    %v1397 = vpop.permute.xlu0 %1396
    %1398 = vset.pattern.permute.xlu0 0
    %1399 = vperm.xlu0 %1398, %v1301
    %v1400 = vpop.permute.xlu0 %1399
    %1401 = vset.pattern.permute.xlu0 0
    %1402 = vperm.xlu0 %1401, %v1303
    %v1403 = vpop.permute.xlu0 %1402
    %1404 = vset.pattern.permute.xlu0 0
    %1405 = vperm.xlu0 %1404, %v1305
    %v1406 = vpop.permute.xlu0 %1405
    %1407 = vset.pattern.permute.xlu0 0
    %1408 = vperm.xlu0 %1407, %v1307
    %v1409 = vpop.permute.xlu0 %1408
    %1410 = vset.pattern.permute.xlu0 0
    %1411 = vperm.xlu0 %1410, %v1309
    %v1412 = vpop.permute.xlu0 %1411
    %1413 = vset.pattern.permute.xlu0 0
    %1414 = vperm.xlu0 %1413, %v1311
    %v1415 = vpop.permute.xlu0 %1414
    %1416 = vset.pattern.permute.xlu0 0
    %1417 = vperm.xlu0 %1416, %v1313
    %v1418 = vpop.permute.xlu0 %1417
    %1419 = vset.pattern.permute.xlu0 0
    %1420 = vperm.xlu0 %1419, %v1315
    %v1421 = vpop.permute.xlu0 %1420
    %1422 = vset.pattern.permute.xlu0 0
    %1423 = vperm.xlu0 %1422, %v1317
    %v1424 = vpop.permute.xlu0 %1423
    %1425 = vset.pattern.permute.xlu0 0
    %1426 = vperm.xlu0 %1425, %v1319
    %v1427 = vpop.permute.xlu0 %1426
    %1428 = vset.pattern.permute.xlu0 0
    %1429 = vperm.xlu0 %1428, %v1321
    %v1430 = vpop.permute.xlu0 %1429
    %1431 = vset.pattern.permute.xlu0 0
    %1432 = vperm.xlu0 %1431, %v1323
    %v1433 = vpop.permute.xlu0 %1432
    %1434 = vset.pattern.permute.xlu0 0
    %1435 = vperm.xlu0 %1434, %v1325
    %v1436 = vpop.permute.xlu0 %1435
    %1437 = vset.pattern.permute.xlu0 0
    %1438 = vperm.xlu0 %1437, %v1327
    %v1439 = vpop.permute.xlu0 %1438
    %1440 = vset.pattern.permute.xlu0 0
    %1441 = vperm.xlu0 %1440, %v1329
    %v1442 = vpop.permute.xlu0 %1441
    %1443 = vset.pattern.permute.xlu0 0
    %1444 = vperm.xlu0 %1443, %v1331
    %v1445 = vpop.permute.xlu0 %1444
    %1446 = vset.pattern.permute.xlu0 0
    %1447 = vperm.xlu0 %1446, %v1333
    %v1448 = vpop.permute.xlu0 %1447
    %1449 = vset.pattern.permute.xlu0 0
    %1450 = vperm.xlu0 %1449, %v1335
    %v1451 = vpop.permute.xlu0 %1450
    %1452 = vset.pattern.permute.xlu0 0
    %1453 = vperm.xlu0 %1452, %v1337
    %v1454 = vpop.permute.xlu0 %1453
    %1455 = vset.pattern.permute.xlu0 0
    %1456 = vperm.xlu0 %1455, %v1339
    %v1457 = vpop.permute.xlu0 %1456
    %1458 = vset.pattern.permute.xlu0 0
    %1459 = vperm.xlu0 %1458, %v1341
    %v1460 = vpop.permute.xlu0 %1459
    %1461 = vset.pattern.permute.xlu0 0
    %1462 = vperm.xlu0 %1461, %v1343
    %v1463 = vpop.permute.xlu0 %1462
    %1464 = vset.pattern.permute.xlu0 0
    %1465 = vperm.xlu0 %1464, %v1345
    %v1466 = vpop.permute.xlu0 %1465
    %1467 = vset.pattern.permute.xlu0 0
    %1468 = vperm.xlu0 %1467, %v1347
    %v1469 = vpop.permute.xlu0 %1468
    %1470 = vset.pattern.permute.xlu0 0
    %1471 = vperm.xlu0 %1470, %v1349
    %v1472 = vpop.permute.xlu0 %1471
    %1473 = vset.pattern.permute.xlu0 0
    %1474 = vperm.xlu0 %1473, %v1351
    %v1475 = vpop.permute.xlu0 %1474
    %1476 = vset.pattern.permute.xlu0 0
    %1477 = vperm.xlu0 %1476, %v1353
    %v1478 = vpop.permute.xlu0 %1477
    %1479 = vset.pattern.permute.xlu0 0
    %1480 = vperm.xlu0 %1479, %v1355
    %v1481 = vpop.permute.xlu0 %1480
    %1482 = vset.pattern.permute.xlu0 0
    %1483 = vperm.xlu0 %1482, %v1357
    %v1484 = vpop.permute.xlu0 %1483
    %1485 = vset.pattern.permute.xlu0 0
    %1486 = vperm.xlu0 %1485, %v1359
    %v1487 = vpop.permute.xlu0 %1486
    %v1488 = vlaneseq
    %v1489 = vshrl.u32 %v1488, 7
    %v1490 = vsub.s32 %v926, %v1489
    %v1491 = vrot.slane %v1394, %v1490
    %v1492 = vlaneseq
    %v1493 = vshrl.u32 %v1492, 7
    %v1494 = vsub.s32 %v926, %v1493
    %v1495 = vrot.slane %v1397, %v1494
    %v1496 = vlaneseq
    %v1497 = vshrl.u32 %v1496, 7
    %v1498 = vsub.s32 %v926, %v1497
    %v1499 = vrot.slane %v1400, %v1498
    %v1500 = vlaneseq
    %v1501 = vshrl.u32 %v1500, 7
    %v1502 = vsub.s32 %v926, %v1501
    %v1503 = vrot.slane %v1403, %v1502
    %v1504 = vlaneseq
    %v1505 = vshrl.u32 %v1504, 7
    %v1506 = vsub.s32 %v926, %v1505
    %v1507 = vrot.slane %v1406, %v1506
    %v1508 = vlaneseq
    %v1509 = vshrl.u32 %v1508, 7
    %v1510 = vsub.s32 %v926, %v1509
    %v1511 = vrot.slane %v1409, %v1510
    %v1512 = vlaneseq
    %v1513 = vshrl.u32 %v1512, 7
    %v1514 = vsub.s32 %v926, %v1513
    %v1515 = vrot.slane %v1412, %v1514
    %v1516 = vlaneseq
    %v1517 = vshrl.u32 %v1516, 7
    %v1518 = vsub.s32 %v926, %v1517
    %v1519 = vrot.slane %v1415, %v1518
    %v1520 = vlaneseq
    %v1521 = vshrl.u32 %v1520, 7
    %v1522 = vsub.s32 %v926, %v1521
    %v1523 = vrot.slane %v1418, %v1522
    %v1524 = vlaneseq
    %v1525 = vshrl.u32 %v1524, 7
    %v1526 = vsub.s32 %v926, %v1525
    %v1527 = vrot.slane %v1421, %v1526
    %v1528 = vlaneseq
    %v1529 = vshrl.u32 %v1528, 7
    %v1530 = vsub.s32 %v926, %v1529
    %v1531 = vrot.slane %v1424, %v1530
    %v1532 = vlaneseq
    %v1533 = vshrl.u32 %v1532, 7
    %v1534 = vsub.s32 %v926, %v1533
    %v1535 = vrot.slane %v1427, %v1534
    %v1536 = vlaneseq
    %v1537 = vshrl.u32 %v1536, 7
    %v1538 = vsub.s32 %v926, %v1537
    %v1539 = vrot.slane %v1430, %v1538
    %v1540 = vlaneseq
    %v1541 = vshrl.u32 %v1540, 7
    %v1542 = vsub.s32 %v926, %v1541
    %v1543 = vrot.slane %v1433, %v1542
    %v1544 = vlaneseq
    %v1545 = vshrl.u32 %v1544, 7
    %v1546 = vsub.s32 %v926, %v1545
    %v1547 = vrot.slane %v1436, %v1546
    %v1548 = vlaneseq
    %v1549 = vshrl.u32 %v1548, 7
    %v1550 = vsub.s32 %v926, %v1549
    %v1551 = vrot.slane %v1439, %v1550
    %v1552 = vlaneseq
    %v1553 = vshrl.u32 %v1552, 7
    %v1554 = vsub.s32 %v926, %v1553
    %v1555 = vrot.slane %v1442, %v1554
    %v1556 = vlaneseq
    %v1557 = vshrl.u32 %v1556, 7
    %v1558 = vsub.s32 %v926, %v1557
    %v1559 = vrot.slane %v1445, %v1558
    %v1560 = vlaneseq
    %v1561 = vshrl.u32 %v1560, 7
    %v1562 = vsub.s32 %v926, %v1561
    %v1563 = vrot.slane %v1448, %v1562
    %v1564 = vlaneseq
    %v1565 = vshrl.u32 %v1564, 7
    %v1566 = vsub.s32 %v926, %v1565
    %v1567 = vrot.slane %v1451, %v1566
    %v1568 = vlaneseq
    %v1569 = vshrl.u32 %v1568, 7
    %v1570 = vsub.s32 %v926, %v1569
    %v1571 = vrot.slane %v1454, %v1570
    %v1572 = vlaneseq
    %v1573 = vshrl.u32 %v1572, 7
    %v1574 = vsub.s32 %v926, %v1573
    %v1575 = vrot.slane %v1457, %v1574
    %v1576 = vlaneseq
    %v1577 = vshrl.u32 %v1576, 7
    %v1578 = vsub.s32 %v926, %v1577
    %v1579 = vrot.slane %v1460, %v1578
    %v1580 = vlaneseq
    %v1581 = vshrl.u32 %v1580, 7
    %v1582 = vsub.s32 %v926, %v1581
    %v1583 = vrot.slane %v1463, %v1582
    %v1584 = vlaneseq
    %v1585 = vshrl.u32 %v1584, 7
    %v1586 = vsub.s32 %v926, %v1585
    %v1587 = vrot.slane %v1466, %v1586
    %v1588 = vlaneseq
    %v1589 = vshrl.u32 %v1588, 7
    %v1590 = vsub.s32 %v926, %v1589
    %v1591 = vrot.slane %v1469, %v1590
    %v1592 = vlaneseq
    %v1593 = vshrl.u32 %v1592, 7
    %v1594 = vsub.s32 %v926, %v1593
    %v1595 = vrot.slane %v1472, %v1594
    %v1596 = vlaneseq
    %v1597 = vshrl.u32 %v1596, 7
    %v1598 = vsub.s32 %v926, %v1597
    %v1599 = vrot.slane %v1475, %v1598
    %v1600 = vlaneseq
    %v1601 = vshrl.u32 %v1600, 7
    %v1602 = vsub.s32 %v926, %v1601
    %v1603 = vrot.slane %v1478, %v1602
    %v1604 = vlaneseq
    %v1605 = vshrl.u32 %v1604, 7
    %v1606 = vsub.s32 %v926, %v1605
    %v1607 = vrot.slane %v1481, %v1606
    %v1608 = vlaneseq
    %v1609 = vshrl.u32 %v1608, 7
    %v1610 = vsub.s32 %v926, %v1609
    %v1611 = vrot.slane %v1484, %v1610
    %v1612 = vlaneseq
    %v1613 = vshrl.u32 %v1612, 7
    %v1614 = vsub.s32 %v926, %v1613
    %v1615 = vrot.slane %v1487, %v1614
    %v1616 = vsel %vm116, %v1495, %v1491
    %v1617 = vsel %vm119, %v1499, %v1616
    %v1618 = vsel %vm122, %v1503, %v1617
    %v1619 = vsel %vm125, %v1507, %v1618
    %v1620 = vsel %vm128, %v1511, %v1619
    %v1621 = vsel %vm131, %v1515, %v1620
    %v1622 = vsel %vm133, %v1519, %v1621
    %v1623 = vsel %vm116, %v1527, %v1523
    %v1624 = vsel %vm119, %v1531, %v1623
    %v1625 = vsel %vm122, %v1535, %v1624
    %v1626 = vsel %vm125, %v1539, %v1625
    %v1627 = vsel %vm128, %v1543, %v1626
    %v1628 = vsel %vm131, %v1547, %v1627
    %v1629 = vsel %vm133, %v1551, %v1628
    %v1630 = vsel %vm116, %v1559, %v1555
    %v1631 = vsel %vm119, %v1563, %v1630
    %v1632 = vsel %vm122, %v1567, %v1631
    %v1633 = vsel %vm125, %v1571, %v1632
    %v1634 = vsel %vm128, %v1575, %v1633
    %v1635 = vsel %vm131, %v1579, %v1634
    %v1636 = vsel %vm133, %v1583, %v1635
    %v1637 = vsel %vm116, %v1591, %v1587
    %v1638 = vsel %vm119, %v1595, %v1637
    %v1639 = vsel %vm122, %v1599, %v1638
    %v1640 = vsel %vm125, %v1603, %v1639
    %v1641 = vsel %vm128, %v1607, %v1640
    %v1642 = vsel %vm131, %v1611, %v1641
    %v1643 = vsel %vm133, %v1615, %v1642
    %v1648 = vsel %vm1087, %v1622, 0.0
    %1649 = vadd.xlane.f32.xlu0 %v1648
    %v1650 = vpop.xlane.xlu0 %1649
    %v1651 = vsel %vm1087, %v1629, 0.0
    %1652 = vadd.xlane.f32.xlu0 %v1651
    %v1653 = vpop.xlane.xlu0 %1652
    %v1654 = vsel %vm1087, %v1636, 0.0
    %1655 = vadd.xlane.f32.xlu0 %v1654
    %v1656 = vpop.xlane.xlu0 %1655
    %v1657 = vsel %vm1087, %v1643, 0.0
    %1658 = vadd.xlane.f32.xlu0 %v1657
    %v1659 = vpop.xlane.xlu0 %1658
    %v1660 = vmul.f32 %v1297, %v799
    %v1661 = vmul.f32 %v1299, %v802
    %v1662 = vmul.f32 %v1301, %v805
    %v1663 = vmul.f32 %v1303, %v808
    %v1664 = vmul.f32 %v1305, %v811
    %v1665 = vmul.f32 %v1307, %v814
    %v1666 = vmul.f32 %v1309, %v817
    %v1667 = vmul.f32 %v1311, %v820
    %v1668 = vmul.f32 %v1313, %v823
    %v1669 = vmul.f32 %v1315, %v826
    %v1670 = vmul.f32 %v1317, %v829
    %v1671 = vmul.f32 %v1319, %v832
    %v1672 = vmul.f32 %v1321, %v835
    %v1673 = vmul.f32 %v1323, %v838
    %v1674 = vmul.f32 %v1325, %v841
    %v1675 = vmul.f32 %v1327, %v844
    %v1676 = vmul.f32 %v1329, %v847
    %v1677 = vmul.f32 %v1331, %v850
    %v1678 = vmul.f32 %v1333, %v853
    %v1679 = vmul.f32 %v1335, %v856
    %v1680 = vmul.f32 %v1337, %v859
    %v1681 = vmul.f32 %v1339, %v862
    %v1682 = vmul.f32 %v1341, %v865
    %v1683 = vmul.f32 %v1343, %v868
    %v1684 = vmul.f32 %v1345, %v871
    %v1685 = vmul.f32 %v1347, %v874
    %v1686 = vmul.f32 %v1349, %v877
    %v1687 = vmul.f32 %v1351, %v880
    %v1688 = vmul.f32 %v1353, %v883
    %v1689 = vmul.f32 %v1355, %v886
    %v1690 = vmul.f32 %v1357, %v889
    %v1691 = vmul.f32 %v1359, %v892
    %1724 = vset.pattern.permute.xlu0 0
    %1725 = vperm.xlu0 %1724, %v1660
    %v1726 = vpop.permute.xlu0 %1725
    %1727 = vset.pattern.permute.xlu0 0
    %1728 = vperm.xlu0 %1727, %v1661
    %v1729 = vpop.permute.xlu0 %1728
    %1730 = vset.pattern.permute.xlu0 0
    %1731 = vperm.xlu0 %1730, %v1662
    %v1732 = vpop.permute.xlu0 %1731
    %1733 = vset.pattern.permute.xlu0 0
    %1734 = vperm.xlu0 %1733, %v1663
    %v1735 = vpop.permute.xlu0 %1734
    %1736 = vset.pattern.permute.xlu0 0
    %1737 = vperm.xlu0 %1736, %v1664
    %v1738 = vpop.permute.xlu0 %1737
    %1739 = vset.pattern.permute.xlu0 0
    %1740 = vperm.xlu0 %1739, %v1665
    %v1741 = vpop.permute.xlu0 %1740
    %1742 = vset.pattern.permute.xlu0 0
    %1743 = vperm.xlu0 %1742, %v1666
    %v1744 = vpop.permute.xlu0 %1743
    %1745 = vset.pattern.permute.xlu0 0
    %1746 = vperm.xlu0 %1745, %v1667
    %v1747 = vpop.permute.xlu0 %1746
    %1748 = vset.pattern.permute.xlu0 0
    %1749 = vperm.xlu0 %1748, %v1668
    %v1750 = vpop.permute.xlu0 %1749
    %1751 = vset.pattern.permute.xlu0 0
    %1752 = vperm.xlu0 %1751, %v1669
    %v1753 = vpop.permute.xlu0 %1752
    %1754 = vset.pattern.permute.xlu0 0
    %1755 = vperm.xlu0 %1754, %v1670
    %v1756 = vpop.permute.xlu0 %1755
    %1757 = vset.pattern.permute.xlu0 0
    %1758 = vperm.xlu0 %1757, %v1671
    %v1759 = vpop.permute.xlu0 %1758
    %1760 = vset.pattern.permute.xlu0 0
    %1761 = vperm.xlu0 %1760, %v1672
    %v1762 = vpop.permute.xlu0 %1761
    %1763 = vset.pattern.permute.xlu0 0
    %1764 = vperm.xlu0 %1763, %v1673
    %v1765 = vpop.permute.xlu0 %1764
    %1766 = vset.pattern.permute.xlu0 0
    %1767 = vperm.xlu0 %1766, %v1674
    %v1768 = vpop.permute.xlu0 %1767
    %1769 = vset.pattern.permute.xlu0 0
    %1770 = vperm.xlu0 %1769, %v1675
    %v1771 = vpop.permute.xlu0 %1770
    %1772 = vset.pattern.permute.xlu0 0
    %1773 = vperm.xlu0 %1772, %v1676
    %v1774 = vpop.permute.xlu0 %1773
    %1775 = vset.pattern.permute.xlu0 0
    %1776 = vperm.xlu0 %1775, %v1677
    %v1777 = vpop.permute.xlu0 %1776
    %1778 = vset.pattern.permute.xlu0 0
    %1779 = vperm.xlu0 %1778, %v1678
    %v1780 = vpop.permute.xlu0 %1779
    %1781 = vset.pattern.permute.xlu0 0
    %1782 = vperm.xlu0 %1781, %v1679
    %v1783 = vpop.permute.xlu0 %1782
    %1784 = vset.pattern.permute.xlu0 0
    %1785 = vperm.xlu0 %1784, %v1680
    %v1786 = vpop.permute.xlu0 %1785
    %1787 = vset.pattern.permute.xlu0 0
    %1788 = vperm.xlu0 %1787, %v1681
    %v1789 = vpop.permute.xlu0 %1788
    %1790 = vset.pattern.permute.xlu0 0
    %1791 = vperm.xlu0 %1790, %v1682
    %v1792 = vpop.permute.xlu0 %1791
    %1793 = vset.pattern.permute.xlu0 0
    %1794 = vperm.xlu0 %1793, %v1683
    %v1795 = vpop.permute.xlu0 %1794
    %1796 = vset.pattern.permute.xlu0 0
    %1797 = vperm.xlu0 %1796, %v1684
    %v1798 = vpop.permute.xlu0 %1797
    %1799 = vset.pattern.permute.xlu0 0
    %1800 = vperm.xlu0 %1799, %v1685
    %v1801 = vpop.permute.xlu0 %1800
    %1802 = vset.pattern.permute.xlu0 0
    %1803 = vperm.xlu0 %1802, %v1686
    %v1804 = vpop.permute.xlu0 %1803
    %1805 = vset.pattern.permute.xlu0 0
    %1806 = vperm.xlu0 %1805, %v1687
    %v1807 = vpop.permute.xlu0 %1806
    %1808 = vset.pattern.permute.xlu0 0
    %1809 = vperm.xlu0 %1808, %v1688
    %v1810 = vpop.permute.xlu0 %1809
    %1811 = vset.pattern.permute.xlu0 0
    %1812 = vperm.xlu0 %1811, %v1689
    %v1813 = vpop.permute.xlu0 %1812
    %1814 = vset.pattern.permute.xlu0 0
    %1815 = vperm.xlu0 %1814, %v1690
    %v1816 = vpop.permute.xlu0 %1815
    %1817 = vset.pattern.permute.xlu0 0
    %1818 = vperm.xlu0 %1817, %v1691
    %v1819 = vpop.permute.xlu0 %1818
    %v1820 = vlaneseq
    %v1821 = vshrl.u32 %v1820, 7
    %v1822 = vsub.s32 %v926, %v1821
    %v1823 = vrot.slane %v1726, %v1822
    %v1824 = vlaneseq
    %v1825 = vshrl.u32 %v1824, 7
    %v1826 = vsub.s32 %v926, %v1825
    %v1827 = vrot.slane %v1729, %v1826
    %v1828 = vlaneseq
    %v1829 = vshrl.u32 %v1828, 7
    %v1830 = vsub.s32 %v926, %v1829
    %v1831 = vrot.slane %v1732, %v1830
    %v1832 = vlaneseq
    %v1833 = vshrl.u32 %v1832, 7
    %v1834 = vsub.s32 %v926, %v1833
    %v1835 = vrot.slane %v1735, %v1834
    %v1836 = vlaneseq
    %v1837 = vshrl.u32 %v1836, 7
    %v1838 = vsub.s32 %v926, %v1837
    %v1839 = vrot.slane %v1738, %v1838
    %v1840 = vlaneseq
    %v1841 = vshrl.u32 %v1840, 7
    %v1842 = vsub.s32 %v926, %v1841
    %v1843 = vrot.slane %v1741, %v1842
    %v1844 = vlaneseq
    %v1845 = vshrl.u32 %v1844, 7
    %v1846 = vsub.s32 %v926, %v1845
    %v1847 = vrot.slane %v1744, %v1846
    %v1848 = vlaneseq
    %v1849 = vshrl.u32 %v1848, 7
    %v1850 = vsub.s32 %v926, %v1849
    %v1851 = vrot.slane %v1747, %v1850
    %v1852 = vlaneseq
    %v1853 = vshrl.u32 %v1852, 7
    %v1854 = vsub.s32 %v926, %v1853
    %v1855 = vrot.slane %v1750, %v1854
    %v1856 = vlaneseq
    %v1857 = vshrl.u32 %v1856, 7
    %v1858 = vsub.s32 %v926, %v1857
    %v1859 = vrot.slane %v1753, %v1858
    %v1860 = vlaneseq
    %v1861 = vshrl.u32 %v1860, 7
    %v1862 = vsub.s32 %v926, %v1861
    %v1863 = vrot.slane %v1756, %v1862
    %v1864 = vlaneseq
    %v1865 = vshrl.u32 %v1864, 7
    %v1866 = vsub.s32 %v926, %v1865
    %v1867 = vrot.slane %v1759, %v1866
    %v1868 = vlaneseq
    %v1869 = vshrl.u32 %v1868, 7
    %v1870 = vsub.s32 %v926, %v1869
    %v1871 = vrot.slane %v1762, %v1870
    %v1872 = vlaneseq
    %v1873 = vshrl.u32 %v1872, 7
    %v1874 = vsub.s32 %v926, %v1873
    %v1875 = vrot.slane %v1765, %v1874
    %v1876 = vlaneseq
    %v1877 = vshrl.u32 %v1876, 7
    %v1878 = vsub.s32 %v926, %v1877
    %v1879 = vrot.slane %v1768, %v1878
    %v1880 = vlaneseq
    %v1881 = vshrl.u32 %v1880, 7
    %v1882 = vsub.s32 %v926, %v1881
    %v1883 = vrot.slane %v1771, %v1882
    %v1884 = vlaneseq
    %v1885 = vshrl.u32 %v1884, 7
    %v1886 = vsub.s32 %v926, %v1885
    %v1887 = vrot.slane %v1774, %v1886
    %v1888 = vlaneseq
    %v1889 = vshrl.u32 %v1888, 7
    %v1890 = vsub.s32 %v926, %v1889
    %v1891 = vrot.slane %v1777, %v1890
    %v1892 = vlaneseq
    %v1893 = vshrl.u32 %v1892, 7
    %v1894 = vsub.s32 %v926, %v1893
    %v1895 = vrot.slane %v1780, %v1894
    %v1896 = vlaneseq
    %v1897 = vshrl.u32 %v1896, 7
    %v1898 = vsub.s32 %v926, %v1897
    %v1899 = vrot.slane %v1783, %v1898
    %v1900 = vlaneseq
    %v1901 = vshrl.u32 %v1900, 7
    %v1902 = vsub.s32 %v926, %v1901
    %v1903 = vrot.slane %v1786, %v1902
    %v1904 = vlaneseq
    %v1905 = vshrl.u32 %v1904, 7
    %v1906 = vsub.s32 %v926, %v1905
    %v1907 = vrot.slane %v1789, %v1906
    %v1908 = vlaneseq
    %v1909 = vshrl.u32 %v1908, 7
    %v1910 = vsub.s32 %v926, %v1909
    %v1911 = vrot.slane %v1792, %v1910
    %v1912 = vlaneseq
    %v1913 = vshrl.u32 %v1912, 7
    %v1914 = vsub.s32 %v926, %v1913
    %v1915 = vrot.slane %v1795, %v1914
    %v1916 = vlaneseq
    %v1917 = vshrl.u32 %v1916, 7
    %v1918 = vsub.s32 %v926, %v1917
    %v1919 = vrot.slane %v1798, %v1918
    %v1920 = vlaneseq
    %v1921 = vshrl.u32 %v1920, 7
    %v1922 = vsub.s32 %v926, %v1921
    %v1923 = vrot.slane %v1801, %v1922
    %v1924 = vlaneseq
    %v1925 = vshrl.u32 %v1924, 7
    %v1926 = vsub.s32 %v926, %v1925
    %v1927 = vrot.slane %v1804, %v1926
    %v1928 = vlaneseq
    %v1929 = vshrl.u32 %v1928, 7
    %v1930 = vsub.s32 %v926, %v1929
    %v1931 = vrot.slane %v1807, %v1930
    %v1932 = vlaneseq
    %v1933 = vshrl.u32 %v1932, 7
    %v1934 = vsub.s32 %v926, %v1933
    %v1935 = vrot.slane %v1810, %v1934
    %v1936 = vlaneseq
    %v1937 = vshrl.u32 %v1936, 7
    %v1938 = vsub.s32 %v926, %v1937
    %v1939 = vrot.slane %v1813, %v1938
    %v1940 = vlaneseq
    %v1941 = vshrl.u32 %v1940, 7
    %v1942 = vsub.s32 %v926, %v1941
    %v1943 = vrot.slane %v1816, %v1942
    %v1944 = vlaneseq
    %v1945 = vshrl.u32 %v1944, 7
    %v1946 = vsub.s32 %v926, %v1945
    %v1947 = vrot.slane %v1819, %v1946
    %v1948 = vsel %vm116, %v1827, %v1823
    %v1949 = vsel %vm119, %v1831, %v1948
    %v1950 = vsel %vm122, %v1835, %v1949
    %v1951 = vsel %vm125, %v1839, %v1950
    %v1952 = vsel %vm128, %v1843, %v1951
    %v1953 = vsel %vm131, %v1847, %v1952
    %v1954 = vsel %vm133, %v1851, %v1953
    %v1955 = vsel %vm116, %v1859, %v1855
    %v1956 = vsel %vm119, %v1863, %v1955
    %v1957 = vsel %vm122, %v1867, %v1956
    %v1958 = vsel %vm125, %v1871, %v1957
    %v1959 = vsel %vm128, %v1875, %v1958
    %v1960 = vsel %vm131, %v1879, %v1959
    %v1961 = vsel %vm133, %v1883, %v1960
    %v1962 = vsel %vm116, %v1891, %v1887
    %v1963 = vsel %vm119, %v1895, %v1962
    %v1964 = vsel %vm122, %v1899, %v1963
    %v1965 = vsel %vm125, %v1903, %v1964
    %v1966 = vsel %vm128, %v1907, %v1965
    %v1967 = vsel %vm131, %v1911, %v1966
    %v1968 = vsel %vm133, %v1915, %v1967
    %v1969 = vsel %vm116, %v1923, %v1919
    %v1970 = vsel %vm119, %v1927, %v1969
    %v1971 = vsel %vm122, %v1931, %v1970
    %v1972 = vsel %vm125, %v1935, %v1971
    %v1973 = vsel %vm128, %v1939, %v1972
    %v1974 = vsel %vm131, %v1943, %v1973
    %v1975 = vsel %vm133, %v1947, %v1974
    %v1980 = vsel %vm1087, %v1954, 0.0
    %1981 = vadd.xlane.f32.xlu0 %v1980
    %v1982 = vpop.xlane.xlu0 %1981
    %v1983 = vsel %vm1087, %v1961, 0.0
    %1984 = vadd.xlane.f32.xlu0 %v1983
    %v1985 = vpop.xlane.xlu0 %1984
    %v1986 = vsel %vm1087, %v1968, 0.0
    %1987 = vadd.xlane.f32.xlu0 %v1986
    %v1988 = vpop.xlane.xlu0 %1987
    %v1989 = vsel %vm1087, %v1975, 0.0
    %1990 = vadd.xlane.f32.xlu0 %v1989
    %v1991 = vpop.xlane.xlu0 %1990
    %v1992 = vrcp.pop %v1650
    %v1993 = vrcp.pop %v1653
    %v1994 = vrcp.pop %v1656
    %v1995 = vrcp.pop %v1659
    %v1996 = vmul.f32 %v1982, %v1992
    %v1997 = vmul.f32 %v1985, %v1993
    %v1998 = vmul.f32 %v1988, %v1994
    %v1999 = vmul.f32 %v1991, %v1995
    %s2000 = sadd.s32 %s47, 0
    %v2001 = vlaneseq
    %v2002 = vshrl.u32 %v2001, 7
    %v2003 = vadd.s32 %v2002, 8
    %v2004 = vadd.s32 %v2002, 16
    %v2005 = vadd.s32 %v2002, 24
    %v2006 = vstv %s2000
    %v2007 = vadd.s32 %v2006, %v2002
    %v2008 = vadd.s32 %v2006, %v2003
    %v2009 = vadd.s32 %v2006, %v2004
    %v2010 = vadd.s32 %v2006, %v2005
    %vm2011 = vcmp.lt.s32.totalorder %v2007, 2
    %vm2012 = vcmp.lt.s32.totalorder %v2008, 2
    %vm2013 = vcmp.lt.s32.totalorder %v2009, 2
    %vm2014 = vcmp.lt.s32.totalorder %v2010, 2
    %v2015 = vsel %vm2011, %v1996, 0.0
    %v2016 = vsel %vm2012, %v1997, 0.0
    %v2017 = vsel %vm2013, %v1998, 0.0
    %v2018 = vsel %vm2014, %v1999, 0.0
    %vm2019 = vcmask 7168
    %2020 = vst.msk [vmem:[%s3] sm:$0xff] %vm2019, %v2015
    %2021 = vst.msk [vmem:[%s3 + $0x8] sm:$0xff] %vm2019, %v2016
    %2022 = vst.msk [vmem:[%s3 + $0x10] sm:$0xff] %vm2019, %v2017
    %2023 = vst.msk [vmem:[%s3 + $0x18] sm:$0xff] %vm2019, %v2018
    // Predicated region
    $region22: #{tpu_custom_call.1} parent=1 // pred_check
      _
    $region23: #{tpu_custom_call.1} parent=1 // pred_check_branch
      %2025 = sbr.rel (0) target = $region25
    $region24: #{tpu_custom_call.1} parent=1 // pred_region
      _
    $region25: #{tpu_custom_call.1} parent=1 // pred_fallthru
      _
    // Predicated region
    $region26: #{tpu_custom_call.1} parent=1 // pred_check
      _
    $region27: #{tpu_custom_call.1} parent=1 // pred_check_branch
      %2027 = sbr.rel (0) target = $region29
    $region28: #{tpu_custom_call.1} parent=1 // pred_region
      _
    $region29: #{tpu_custom_call.1} parent=1 // pred_fallthru
      _
    %2028 = vsyncpa [#allocation3], 1
    %2029 = vsyncpa [#allocation5], 1

</llo_original>
